<compile_context>
chip_gen: v7x
topology: tpu7x:2x2x1
jax: 0.10.0
libtpu: 0.0.40
codegen_flags: <defaults>
</compile_context>

<pallas_src>
import jax
import jax.numpy as jnp
from jax.experimental import pallas as pl
from jax.experimental.pallas import tpu as pltpu

EPS = 1e-5      # BatchNorm2d default eps
LANES = 128     # lane width of the packed-parameter buffer


# ----------------------------- Pallas kernel --------------------------------

def _make_kernel(B, seg_shapes, seg_offsets):
    """Build the fused DeepConvNet kernel.

    seg_shapes / seg_offsets describe the 8 parameter segments packed row-wise
    into a single (rows, 128) f32 buffer, in the order
    (w1, s1, w2, s2, w3, s3, fcw, fcb).  All entries are static Python ints.
    """

    def kernel(x_ref, p_ref, o_ref):
        def seg(i):
            r, c = seg_shapes[i]
            o = seg_offsets[i]
            return p_ref[o:o + r, 0:c]

        w1, s1, w2, s2, w3, s3, fcw, fcb = (seg(i) for i in range(8))

        def block(hs, w, s):
            """conv(1x5) + folded-BN + ELU + MaxPool(1,2) for all batch elems.

            hs: list of B per-batch (W, Cin) activations (SSA values)
            w:  (5*Cin, Cout) conv weight, BN scale folded, taps along rows
            s:  (1, Cout) conv bias + BN shift
            returns list of B per-batch (Wp, Cout) pooled activations.
            """
            W, C = hs[0].shape
            cout = w.shape[1]
            wout = W - 4                      # valid conv, kernel width 5
            wp = (wout - 2) // 2 + 1          # MaxPool2d((1,2),(1,2)), floor

            # taps -> lanes, batch -> sublanes: one MXU dot per block.
            slab = jnp.concatenate(
                [jnp.concatenate([h[t:t + wout, :] for t in range(5)], axis=-1)
                 for h in hs],
                axis=0)                                        # (B*wout, 5*C)
            y = jnp.dot(slab, w, preferred_element_type=jnp.float32) + s
            # ELU(alpha=1); exp()-1 kept (guaranteed Mosaic lowering).
            y = jnp.where(y > 0.0, y, jnp.exp(jnp.minimum(y, 0.0)) - 1.0)
            # MaxPool over time pairs, per batch element (wout may be odd).
            return [
                jnp.max(y[b * wout:b * wout + 2 * wp, :].reshape(wp, 2, cout),
                        axis=1)
                for b in range(len(hs))
            ]

        hs = [x_ref[b] for b in range(B)]      # per-batch (T, N) activations
        hs = block(hs, w1, s1)                 # block1 (two convs pre-fused)
        hs = block(hs, w2, s2)                 # block2
        hs = block(hs, w3, s3)                 # block3

        # classifier: fcw is pre-permuted to the kernel's time-major flatten
        # order (row index t*C3 + c), so each pooled timestep contributes one
        # batched (B, C3) x (C3, ncls) dot.  Single unmasked logits store.
        wp3, c3 = hs[0].shape
        ht0 = jnp.concatenate([h[0:1, :] for h in hs], axis=0)        # (B, C3)
        logits = fcb + jnp.dot(ht0, fcw[0:c3, :],
                               preferred_element_type=jnp.float32)
        for t in range(1, wp3):
            ht = jnp.concatenate([h[t:t + 1, :] for h in hs], axis=0)
            logits = logits + jnp.dot(ht, fcw[t * c3:(t + 1) * c3, :],
                                      preferred_element_type=jnp.float32)
        o_ref[...] = logits
        # TODO(synk): Dropout(0.5) layers are eval-mode identity; training-mode
        # dropout is omitted.

    return kernel


# ------------------------------ JAX wrapper ----------------------------------

def _fold_bn_into_weights(w_ock, bias, gamma, beta, mean, var):
    """(Cout, Cin, 5) conv weight + eval BN -> (5*Cin, Cout) weight, (1, Cout) shift."""
    scale = gamma / jnp.sqrt(var + EPS)
    shift = (bias - mean) * scale + beta
    w_taps = jnp.transpose(w_ock, (2, 1, 0)) * scale[None, None, :]   # (5, Cin, Cout)
    k, cin, cout = w_taps.shape
    return (w_taps.reshape(k * cin, cout).astype(jnp.float32),
            shift.reshape(1, -1).astype(jnp.float32))


def _pack_segments(segs):
    """Pack 2D segments into one (rows, LANES) f32 buffer; per-segment rows 8-aligned."""
    padded, offsets, off = [], [], 0
    for a in segs:
        r, c = a.shape
        assert c <= LANES
        rr = -(-r // 8) * 8
        offsets.append(off)
        padded.append(jnp.pad(a.astype(jnp.float32), ((0, rr - r), (0, LANES - c))))
        off += rr
    return jnp.concatenate(padded, axis=0), tuple(offsets)


@jax.jit
def deepconvnet_forward(x, p):
    """x: (B, 1, node_size, T) NCHW float32 -> logits (B, num_classes)."""
    B, _, N, T = x.shape
    K = p["w1"].shape[0]
    ncls = p["fc_w"].shape[0]

    # time-major, channel-last input: (B, T, N)
    x_t = jnp.transpose(x[:, 0, :, :], (0, 2, 1)).astype(jnp.float32)

    # block1: Conv2d(1,K,(1,5)) then Conv2d(K,K,(N,1), no bias) -> one (K, N, 5) conv
    w_eff = jnp.einsum("okn,kd->ond", p["w2"][..., 0], p["w1"][:, 0, 0, :])   # (K, N, 5)
    b_eff = jnp.einsum("okn,k->o", p["w2"][..., 0], p["b1"])                  # (K,)
    w1t, s1 = _fold_bn_into_weights(w_eff, b_eff,
                                    p["bn1_g"], p["bn1_b"], p["bn1_m"], p["bn1_v"])
    w2t, s2 = _fold_bn_into_weights(p["w3"][:, :, 0, :], p["b3"],
                                    p["bn2_g"], p["bn2_b"], p["bn2_m"], p["bn2_v"])
    w3t, s3 = _fold_bn_into_weights(p["w4"][:, :, 0, :], p["b4"],
                                    p["bn3_g"], p["bn3_b"], p["bn3_m"], p["bn3_v"])

    # static pooled widths
    wp1 = (T - 4 - 2) // 2 + 1
    wp2 = (wp1 - 4 - 2) // 2 + 1
    wp3 = (wp2 - 4 - 2) // 2 + 1
    c3 = 4 * K

    # classifier weight permuted to the kernel's time-major flatten order:
    # torch.flatten feature index c*wp3 + t  ->  kernel row index t*c3 + c
    fcw_tm = jnp.transpose(p["fc_w"].T.reshape(c3, wp3, ncls), (1, 0, 2))
    fcw_tm = fcw_tm.reshape(wp3 * c3, ncls).astype(jnp.float32)
    fcb = p["fc_b"].reshape(1, ncls).astype(jnp.float32)

    segs = (w1t, s1, w2t, s2, w3t, s3, fcw_tm, fcb)
    params_buf, offsets = _pack_segments(segs)
    seg_shapes = tuple(tuple(a.shape) for a in segs)

    kernel = _make_kernel(B, seg_shapes, offsets)

    return pl.pallas_call(
        kernel,
        out_shape=jax.ShapeDtypeStruct((B, ncls), jnp.float32),
        in_specs=[pl.BlockSpec(x_t.shape, lambda: (0, 0, 0)),
                  pl.BlockSpec(params_buf.shape, lambda: (0, 0))],
        out_specs=pl.BlockSpec((B, ncls), lambda: (0, 0)),
        compiler_params=pltpu.CompilerParams(vmem_limit_bytes=32 * 1024 * 1024),
    )(x_t, params_buf)


# ------------------------- deterministic params ------------------------------

def init_params(key, num_classes, time_series_size, num_kernels, node_size):
    K, N = num_kernels, node_size
    keys = jax.random.split(key, 24)
    rnd = lambda k, shape, s=0.1: s * jax.random.normal(k, shape, dtype=jnp.float32)

    p = {}
    # block1
    p["w1"] = rnd(keys[0], (K, 1, 1, 5))
    p["b1"] = rnd(keys[1], (K,))
    p["w2"] = rnd(keys[2], (K, K, N, 1))            # no bias
    p["bn1_g"] = 1.0 + rnd(keys[3], (K,))
    p["bn1_b"] = rnd(keys[4], (K,))
    p["bn1_m"] = rnd(keys[5], (K,))
    p["bn1_v"] = jnp.abs(1.0 + rnd(keys[6], (K,)))
    # block2
    p["w3"] = rnd(keys[7], (2 * K, K, 1, 5))
    p["b3"] = rnd(keys[8], (2 * K,))
    p["bn2_g"] = 1.0 + rnd(keys[9], (2 * K,))
    p["bn2_b"] = rnd(keys[10], (2 * K,))
    p["bn2_m"] = rnd(keys[11], (2 * K,))
    p["bn2_v"] = jnp.abs(1.0 + rnd(keys[12], (2 * K,)))
    # block3
    p["w4"] = rnd(keys[13], (4 * K, 2 * K, 1, 5))
    p["b4"] = rnd(keys[14], (4 * K,))
    p["bn3_g"] = 1.0 + rnd(keys[15], (4 * K,))
    p["bn3_b"] = rnd(keys[16], (4 * K,))
    p["bn3_m"] = rnd(keys[17], (4 * K,))
    p["bn3_v"] = jnp.abs(1.0 + rnd(keys[18], (4 * K,)))
    # classifier (same hidden_size formula as the PyTorch module)
    h = (time_series_size - 5 + 1 - 2) // 2 + 1
    h = (h - 5 + 1 - 2) // 2 + 1
    hidden = ((h - 5 + 1 - 2) // 2 + 1) * 4 * K
    p["fc_w"] = rnd(keys[19], (num_classes, hidden))
    p["fc_b"] = rnd(keys[20], (num_classes,))
    return p


# -------------------------- pure-JAX reference -------------------------------

def _ref_conv_time(x, w, b=None):
    # x: (B, C, H, W); w: (O, C, 1, k)
    k = w.shape[-1]
    Wo = x.shape[-1] - k + 1
    cols = jnp.stack([x[..., i:i + Wo] for i in range(k)], axis=-1)  # (B,C,H,Wo,k)
    y = jnp.einsum("bchwd,ocd->bohw", cols, w[:, :, 0, :])
    if b is not None:
        y = y + b[None, :, None, None]
    return y


def _ref_bn_elu_pool(y, g, bta, m, v):
    y = (y - m[None, :, None, None]) / jnp.sqrt(v[None, :, None, None] + EPS)
    y = y * g[None, :, None, None] + bta[None, :, None, None]
    y = jnp.where(y > 0, y, jnp.exp(jnp.minimum(y, 0.0)) - 1.0)
    W = y.shape[-1]
    Wp = (W - 2) // 2 + 1
    y = y[..., : 2 * Wp].reshape(y.shape[:-1] + (Wp, 2))
    return jnp.max(y, axis=-1)


def ref_forward(x, p):
    h = _ref_conv_time(x, p["w1"], p["b1"])                                # (B,K,N,T-4)
    h = jnp.einsum("bcnw,ocn->bow", h, p["w2"][..., 0])[:, :, None, :]     # (B,K,1,T-4)
    h = _ref_bn_elu_pool(h, p["bn1_g"], p["bn1_b"], p["bn1_m"], p["bn1_v"])
    h = _ref_conv_time(h, p["w3"], p["b3"])
    h = _ref_bn_elu_pool(h, p["bn2_g"], p["bn2_b"], p["bn2_m"], p["bn2_v"])
    h = _ref_conv_time(h, p["w4"], p["b4"])
    h = _ref_bn_elu_pool(h, p["bn3_g"], p["bn3_b"], p["bn3_m"], p["bn3_v"])
    feats = h.reshape(h.shape[0], -1)
    return feats @ p["fc_w"].T + p["fc_b"]


# ---------------------------------- main -------------------------------------

if __name__ == "__main__":
    num_classes, T, K, N, B = 3, 48, 4, 8, 2  # small shapes consistent with the module
    key = jax.random.PRNGKey(0)
    kx, kp = jax.random.split(key)
    x = jax.random.normal(kx, (B, 1, N, T), dtype=jnp.float32)  # NCHW like PyTorch
    params = init_params(kp, num_classes, T, K, N)

    logits = jax.block_until_ready(deepconvnet_forward(x, params))
    ref = ref_forward(x, params)

    assert logits.shape == (B, num_classes), logits.shape
    assert jnp.allclose(logits, ref, atol=1e-3, rtol=1e-3), (logits, ref)
    print("KERNEL_OK")
</pallas_src>

<mosaic_0001>
module attributes {stable_mosaic.version = 11 : i64} {
  func.func @kernel(%arg0: memref<2x48x8xf32, #tpu.memory_space<vmem>>, %arg1: memref<168x128xf32, #tpu.memory_space<vmem>>, %arg2: memref<2x3xf32, #tpu.memory_space<vmem>>) attributes {dimension_semantics = [], scalar_prefetch = 0 : i64, scratch_operands = 0 : i64, tpu.core_type = #tpu.core_type<tc>} {
    %c0 = arith.constant 0 : index
    %c0_0 = arith.constant 0 : index
    %0 = vector.load %arg1[%c0, %c0_0] : memref<168x128xf32, #tpu.memory_space<vmem>>, vector<40x4xf32>
    %c40 = arith.constant 40 : index
    %c0_1 = arith.constant 0 : index
    %1 = vector.load %arg1[%c40, %c0_1] : memref<168x128xf32, #tpu.memory_space<vmem>>, vector<1x4xf32>
    %c48 = arith.constant 48 : index
    %c0_2 = arith.constant 0 : index
    %2 = vector.load %arg1[%c48, %c0_2] : memref<168x128xf32, #tpu.memory_space<vmem>>, vector<20x8xf32>
    %c72 = arith.constant 72 : index
    %c0_3 = arith.constant 0 : index
    %3 = vector.load %arg1[%c72, %c0_3] : memref<168x128xf32, #tpu.memory_space<vmem>>, vector<1x8xf32>
    %c80 = arith.constant 80 : index
    %c0_4 = arith.constant 0 : index
    %4 = vector.load %arg1[%c80, %c0_4] : memref<168x128xf32, #tpu.memory_space<vmem>>, vector<40x16xf32>
    %c120 = arith.constant 120 : index
    %c0_5 = arith.constant 0 : index
    %5 = vector.load %arg1[%c120, %c0_5] : memref<168x128xf32, #tpu.memory_space<vmem>>, vector<1x16xf32>
    %c128 = arith.constant 128 : index
    %c0_6 = arith.constant 0 : index
    %6 = vector.load %arg1[%c128, %c0_6] : memref<168x128xf32, #tpu.memory_space<vmem>>, vector<32x3xf32>
    %c160 = arith.constant 160 : index
    %c0_7 = arith.constant 0 : index
    %7 = vector.load %arg1[%c160, %c0_7] : memref<168x128xf32, #tpu.memory_space<vmem>>, vector<1x3xf32>
    %c0_8 = arith.constant 0 : index
    %c0_9 = arith.constant 0 : index
    %c0_10 = arith.constant 0 : index
    %8 = vector.load %arg0[%c0_8, %c0_9, %c0_10] : memref<2x48x8xf32, #tpu.memory_space<vmem>>, vector<1x48x8xf32>
    %9 = vector.shape_cast %8 : vector<1x48x8xf32> to vector<48x8xf32>
    %c1 = arith.constant 1 : index
    %c0_11 = arith.constant 0 : index
    %c0_12 = arith.constant 0 : index
    %10 = vector.load %arg0[%c1, %c0_11, %c0_12] : memref<2x48x8xf32, #tpu.memory_space<vmem>>, vector<1x48x8xf32>
    %11 = vector.shape_cast %10 : vector<1x48x8xf32> to vector<48x8xf32>
    %12 = vector.extract_strided_slice %9 {offsets = [0, 0], sizes = [44, 8], strides = [1, 1]} : vector<48x8xf32> to vector<44x8xf32>
    %13 = vector.extract_strided_slice %9 {offsets = [1, 0], sizes = [44, 8], strides = [1, 1]} : vector<48x8xf32> to vector<44x8xf32>
    %14 = vector.extract_strided_slice %9 {offsets = [2, 0], sizes = [44, 8], strides = [1, 1]} : vector<48x8xf32> to vector<44x8xf32>
    %15 = vector.extract_strided_slice %9 {offsets = [3, 0], sizes = [44, 8], strides = [1, 1]} : vector<48x8xf32> to vector<44x8xf32>
    %16 = vector.extract_strided_slice %9 {offsets = [4, 0], sizes = [44, 8], strides = [1, 1]} : vector<48x8xf32> to vector<44x8xf32>
    %17 = tpu.concatenate %12, %13, %14, %15, %16 in 1 : vector<44x8xf32>, vector<44x8xf32>, vector<44x8xf32>, vector<44x8xf32>, vector<44x8xf32> -> vector<44x40xf32>
    %18 = vector.extract_strided_slice %11 {offsets = [0, 0], sizes = [44, 8], strides = [1, 1]} : vector<48x8xf32> to vector<44x8xf32>
    %19 = vector.extract_strided_slice %11 {offsets = [1, 0], sizes = [44, 8], strides = [1, 1]} : vector<48x8xf32> to vector<44x8xf32>
    %20 = vector.extract_strided_slice %11 {offsets = [2, 0], sizes = [44, 8], strides = [1, 1]} : vector<48x8xf32> to vector<44x8xf32>
    %21 = vector.extract_strided_slice %11 {offsets = [3, 0], sizes = [44, 8], strides = [1, 1]} : vector<48x8xf32> to vector<44x8xf32>
    %22 = vector.extract_strided_slice %11 {offsets = [4, 0], sizes = [44, 8], strides = [1, 1]} : vector<48x8xf32> to vector<44x8xf32>
    %23 = tpu.concatenate %18, %19, %20, %21, %22 in 1 : vector<44x8xf32>, vector<44x8xf32>, vector<44x8xf32>, vector<44x8xf32>, vector<44x8xf32> -> vector<44x40xf32>
    %24 = tpu.concatenate %17, %23 in 0 : vector<44x40xf32>, vector<44x40xf32> -> vector<88x40xf32>
    %cst = arith.constant dense<0.000000e+00> : vector<88x4xf32>
    %25 = tpu.matmul %24, %0, %cst {dimension_numbers = #tpu.dot_dimension_numbers<[1], [0], [0], [1], [0, 0, 1, 1], [], []>} : vector<88x40xf32>, vector<40x4xf32>, vector<88x4xf32> -> vector<88x4xf32>
    %26 = vector.broadcast %1 : vector<1x4xf32> to vector<88x4xf32>
    %27 = arith.addf %25, %26 : vector<88x4xf32>
    %cst_13 = arith.constant 0.000000e+00 : f32
    %28 = vector.broadcast %cst_13 : f32 to vector<88x4xf32>
    %29 = arith.cmpf ogt, %27, %28 : vector<88x4xf32>
    %cst_14 = arith.constant 0.000000e+00 : f32
    %30 = vector.broadcast %cst_14 : f32 to vector<88x4xf32>
    %31 = arith.minimumf %27, %30 : vector<88x4xf32>
    %32 = math.exp %31 : vector<88x4xf32>
    %cst_15 = arith.constant 1.000000e+00 : f32
    %33 = vector.broadcast %cst_15 : f32 to vector<88x4xf32>
    %34 = arith.subf %32, %33 : vector<88x4xf32>
    %35 = arith.select %29, %27, %34 : vector<88x4xi1>, vector<88x4xf32>
    %36 = vector.extract_strided_slice %35 {offsets = [0, 0], sizes = [44, 4], strides = [1, 1]} : vector<88x4xf32> to vector<44x4xf32>
    %37 = vector.shape_cast %36 : vector<44x4xf32> to vector<22x2x4xf32>
    %cst_16 = arith.constant dense<0xFF800000> : vector<22x4xf32>
    %38 = vector.multi_reduction <maximumf>, %37, %cst_16 [1] : vector<22x2x4xf32> to vector<22x4xf32>
    %39 = vector.extract_strided_slice %35 {offsets = [44, 0], sizes = [44, 4], strides = [1, 1]} : vector<88x4xf32> to vector<44x4xf32>
    %40 = vector.shape_cast %39 : vector<44x4xf32> to vector<22x2x4xf32>
    %cst_17 = arith.constant dense<0xFF800000> : vector<22x4xf32>
    %41 = vector.multi_reduction <maximumf>, %40, %cst_17 [1] : vector<22x2x4xf32> to vector<22x4xf32>
    %42 = vector.extract_strided_slice %38 {offsets = [0, 0], sizes = [18, 4], strides = [1, 1]} : vector<22x4xf32> to vector<18x4xf32>
    %43 = vector.extract_strided_slice %38 {offsets = [1, 0], sizes = [18, 4], strides = [1, 1]} : vector<22x4xf32> to vector<18x4xf32>
    %44 = vector.extract_strided_slice %38 {offsets = [2, 0], sizes = [18, 4], strides = [1, 1]} : vector<22x4xf32> to vector<18x4xf32>
    %45 = vector.extract_strided_slice %38 {offsets = [3, 0], sizes = [18, 4], strides = [1, 1]} : vector<22x4xf32> to vector<18x4xf32>
    %46 = vector.extract_strided_slice %38 {offsets = [4, 0], sizes = [18, 4], strides = [1, 1]} : vector<22x4xf32> to vector<18x4xf32>
    %47 = tpu.concatenate %42, %43, %44, %45, %46 in 1 : vector<18x4xf32>, vector<18x4xf32>, vector<18x4xf32>, vector<18x4xf32>, vector<18x4xf32> -> vector<18x20xf32>
    %48 = vector.extract_strided_slice %41 {offsets = [0, 0], sizes = [18, 4], strides = [1, 1]} : vector<22x4xf32> to vector<18x4xf32>
    %49 = vector.extract_strided_slice %41 {offsets = [1, 0], sizes = [18, 4], strides = [1, 1]} : vector<22x4xf32> to vector<18x4xf32>
    %50 = vector.extract_strided_slice %41 {offsets = [2, 0], sizes = [18, 4], strides = [1, 1]} : vector<22x4xf32> to vector<18x4xf32>
    %51 = vector.extract_strided_slice %41 {offsets = [3, 0], sizes = [18, 4], strides = [1, 1]} : vector<22x4xf32> to vector<18x4xf32>
    %52 = vector.extract_strided_slice %41 {offsets = [4, 0], sizes = [18, 4], strides = [1, 1]} : vector<22x4xf32> to vector<18x4xf32>
    %53 = tpu.concatenate %48, %49, %50, %51, %52 in 1 : vector<18x4xf32>, vector<18x4xf32>, vector<18x4xf32>, vector<18x4xf32>, vector<18x4xf32> -> vector<18x20xf32>
    %54 = tpu.concatenate %47, %53 in 0 : vector<18x20xf32>, vector<18x20xf32> -> vector<36x20xf32>
    %cst_18 = arith.constant dense<0.000000e+00> : vector<36x8xf32>
    %55 = tpu.matmul %54, %2, %cst_18 {dimension_numbers = #tpu.dot_dimension_numbers<[1], [0], [0], [1], [0, 0, 1, 1], [], []>} : vector<36x20xf32>, vector<20x8xf32>, vector<36x8xf32> -> vector<36x8xf32>
    %56 = vector.broadcast %3 : vector<1x8xf32> to vector<36x8xf32>
    %57 = arith.addf %55, %56 : vector<36x8xf32>
    %cst_19 = arith.constant 0.000000e+00 : f32
    %58 = vector.broadcast %cst_19 : f32 to vector<36x8xf32>
    %59 = arith.cmpf ogt, %57, %58 : vector<36x8xf32>
    %cst_20 = arith.constant 0.000000e+00 : f32
    %60 = vector.broadcast %cst_20 : f32 to vector<36x8xf32>
    %61 = arith.minimumf %57, %60 : vector<36x8xf32>
    %62 = math.exp %61 : vector<36x8xf32>
    %cst_21 = arith.constant 1.000000e+00 : f32
    %63 = vector.broadcast %cst_21 : f32 to vector<36x8xf32>
    %64 = arith.subf %62, %63 : vector<36x8xf32>
    %65 = arith.select %59, %57, %64 : vector<36x8xi1>, vector<36x8xf32>
    %66 = vector.extract_strided_slice %65 {offsets = [0, 0], sizes = [18, 8], strides = [1, 1]} : vector<36x8xf32> to vector<18x8xf32>
    %67 = vector.shape_cast %66 : vector<18x8xf32> to vector<9x2x8xf32>
    %cst_22 = arith.constant dense<0xFF800000> : vector<9x8xf32>
    %68 = vector.multi_reduction <maximumf>, %67, %cst_22 [1] : vector<9x2x8xf32> to vector<9x8xf32>
    %69 = vector.extract_strided_slice %65 {offsets = [18, 0], sizes = [18, 8], strides = [1, 1]} : vector<36x8xf32> to vector<18x8xf32>
    %70 = vector.shape_cast %69 : vector<18x8xf32> to vector<9x2x8xf32>
    %cst_23 = arith.constant dense<0xFF800000> : vector<9x8xf32>
    %71 = vector.multi_reduction <maximumf>, %70, %cst_23 [1] : vector<9x2x8xf32> to vector<9x8xf32>
    %72 = vector.extract_strided_slice %68 {offsets = [0, 0], sizes = [5, 8], strides = [1, 1]} : vector<9x8xf32> to vector<5x8xf32>
    %73 = vector.extract_strided_slice %68 {offsets = [1, 0], sizes = [5, 8], strides = [1, 1]} : vector<9x8xf32> to vector<5x8xf32>
    %74 = vector.extract_strided_slice %68 {offsets = [2, 0], sizes = [5, 8], strides = [1, 1]} : vector<9x8xf32> to vector<5x8xf32>
    %75 = vector.extract_strided_slice %68 {offsets = [3, 0], sizes = [5, 8], strides = [1, 1]} : vector<9x8xf32> to vector<5x8xf32>
    %76 = vector.extract_strided_slice %68 {offsets = [4, 0], sizes = [5, 8], strides = [1, 1]} : vector<9x8xf32> to vector<5x8xf32>
    %77 = tpu.concatenate %72, %73, %74, %75, %76 in 1 : vector<5x8xf32>, vector<5x8xf32>, vector<5x8xf32>, vector<5x8xf32>, vector<5x8xf32> -> vector<5x40xf32>
    %78 = vector.extract_strided_slice %71 {offsets = [0, 0], sizes = [5, 8], strides = [1, 1]} : vector<9x8xf32> to vector<5x8xf32>
    %79 = vector.extract_strided_slice %71 {offsets = [1, 0], sizes = [5, 8], strides = [1, 1]} : vector<9x8xf32> to vector<5x8xf32>
    %80 = vector.extract_strided_slice %71 {offsets = [2, 0], sizes = [5, 8], strides = [1, 1]} : vector<9x8xf32> to vector<5x8xf32>
    %81 = vector.extract_strided_slice %71 {offsets = [3, 0], sizes = [5, 8], strides = [1, 1]} : vector<9x8xf32> to vector<5x8xf32>
    %82 = vector.extract_strided_slice %71 {offsets = [4, 0], sizes = [5, 8], strides = [1, 1]} : vector<9x8xf32> to vector<5x8xf32>
    %83 = tpu.concatenate %78, %79, %80, %81, %82 in 1 : vector<5x8xf32>, vector<5x8xf32>, vector<5x8xf32>, vector<5x8xf32>, vector<5x8xf32> -> vector<5x40xf32>
    %84 = tpu.concatenate %77, %83 in 0 : vector<5x40xf32>, vector<5x40xf32> -> vector<10x40xf32>
    %cst_24 = arith.constant dense<0.000000e+00> : vector<10x16xf32>
    %85 = tpu.matmul %84, %4, %cst_24 {dimension_numbers = #tpu.dot_dimension_numbers<[1], [0], [0], [1], [0, 0, 1, 1], [], []>} : vector<10x40xf32>, vector<40x16xf32>, vector<10x16xf32> -> vector<10x16xf32>
    %86 = vector.broadcast %5 : vector<1x16xf32> to vector<10x16xf32>
    %87 = arith.addf %85, %86 : vector<10x16xf32>
    %cst_25 = arith.constant 0.000000e+00 : f32
    %88 = vector.broadcast %cst_25 : f32 to vector<10x16xf32>
    %89 = arith.cmpf ogt, %87, %88 : vector<10x16xf32>
    %cst_26 = arith.constant 0.000000e+00 : f32
    %90 = vector.broadcast %cst_26 : f32 to vector<10x16xf32>
    %91 = arith.minimumf %87, %90 : vector<10x16xf32>
    %92 = math.exp %91 : vector<10x16xf32>
    %cst_27 = arith.constant 1.000000e+00 : f32
    %93 = vector.broadcast %cst_27 : f32 to vector<10x16xf32>
    %94 = arith.subf %92, %93 : vector<10x16xf32>
    %95 = arith.select %89, %87, %94 : vector<10x16xi1>, vector<10x16xf32>
    %96 = vector.extract_strided_slice %95 {offsets = [0, 0], sizes = [4, 16], strides = [1, 1]} : vector<10x16xf32> to vector<4x16xf32>
    %97 = vector.shape_cast %96 : vector<4x16xf32> to vector<2x2x16xf32>
    %cst_28 = arith.constant dense<0xFF800000> : vector<2x16xf32>
    %98 = vector.multi_reduction <maximumf>, %97, %cst_28 [1] : vector<2x2x16xf32> to vector<2x16xf32>
    %99 = vector.extract_strided_slice %95 {offsets = [5, 0], sizes = [4, 16], strides = [1, 1]} : vector<10x16xf32> to vector<4x16xf32>
    %100 = vector.shape_cast %99 : vector<4x16xf32> to vector<2x2x16xf32>
    %cst_29 = arith.constant dense<0xFF800000> : vector<2x16xf32>
    %101 = vector.multi_reduction <maximumf>, %100, %cst_29 [1] : vector<2x2x16xf32> to vector<2x16xf32>
    %102 = vector.extract_strided_slice %98 {offsets = [0, 0], sizes = [1, 16], strides = [1, 1]} : vector<2x16xf32> to vector<1x16xf32>
    %103 = vector.extract_strided_slice %101 {offsets = [0, 0], sizes = [1, 16], strides = [1, 1]} : vector<2x16xf32> to vector<1x16xf32>
    %104 = tpu.concatenate %102, %103 in 0 : vector<1x16xf32>, vector<1x16xf32> -> vector<2x16xf32>
    %105 = vector.extract_strided_slice %6 {offsets = [0, 0], sizes = [16, 3], strides = [1, 1]} : vector<32x3xf32> to vector<16x3xf32>
    %cst_30 = arith.constant dense<0.000000e+00> : vector<2x3xf32>
    %106 = tpu.matmul %104, %105, %cst_30 {dimension_numbers = #tpu.dot_dimension_numbers<[1], [0], [0], [1], [0, 0, 1, 1], [], []>} : vector<2x16xf32>, vector<16x3xf32>, vector<2x3xf32> -> vector<2x3xf32>
    %107 = vector.broadcast %7 : vector<1x3xf32> to vector<2x3xf32>
    %108 = arith.addf %107, %106 : vector<2x3xf32>
    %109 = vector.extract_strided_slice %98 {offsets = [1, 0], sizes = [1, 16], strides = [1, 1]} : vector<2x16xf32> to vector<1x16xf32>
    %110 = vector.extract_strided_slice %101 {offsets = [1, 0], sizes = [1, 16], strides = [1, 1]} : vector<2x16xf32> to vector<1x16xf32>
    %111 = tpu.concatenate %109, %110 in 0 : vector<1x16xf32>, vector<1x16xf32> -> vector<2x16xf32>
    %112 = vector.extract_strided_slice %6 {offsets = [16, 0], sizes = [16, 3], strides = [1, 1]} : vector<32x3xf32> to vector<16x3xf32>
    %cst_31 = arith.constant dense<0.000000e+00> : vector<2x3xf32>
    %113 = tpu.matmul %111, %112, %cst_31 {dimension_numbers = #tpu.dot_dimension_numbers<[1], [0], [0], [1], [0, 0, 1, 1], [], []>} : vector<2x16xf32>, vector<16x3xf32>, vector<2x3xf32> -> vector<2x3xf32>
    %114 = arith.addf %108, %113 : vector<2x3xf32>
    %c0_32 = arith.constant 0 : index
    %c0_33 = arith.constant 0 : index
    %115 = vector.load %arg2[%c0_32, %c0_33] : memref<2x3xf32, #tpu.memory_space<vmem>>, vector<2x3xf32>
    tpu.vector_store %arg2[%c0_32, %c0_33], %114 {strides = array<i32>} : memref<2x3xf32, #tpu.memory_space<vmem>>, vector<2x3xf32>,
    return
  }
}

</mosaic_0001>

<llo_original>
// kernel: deepconvnet_forward.1
$region0: #{deepconvnet_forward.1}
  #allocation0 [shape = 'u32[]', space=smem, size = 0x4, offset = 0x4, fixed_abs, tag = 'smem constant byte address 0x4 - core index']
  #allocation1 [shape = 'u32[144,128]{1,0:T(1,128)}', space=vmem, size = 0x12000, scoped, tag = 'internal scratch']
  %s0 = inlined_call_operand.vmem [shape: f32[2,48,8], index: 0, kind: input, shape index: {}]
  %s1 = inlined_call_operand.vmem [shape: f32[168,128], index: 1, kind: input, shape index: {}]
  %s2 = inlined_call_operand.hbm [shape: f32[2,3], index: 2, kind: output, shape index: {}]
  %s3 = sld [smem:[#allocation0]]
  $region18: #{deepconvnet_forward.1} parent=0
    _
  %s5 = ssub.s32 1, %s3
  %s6 = scalar_select 0, %s5, %s3
  $region1: #{deepconvnet_forward.1} parent=0
    #allocation2 [shape = 'u8[1024]{0}', space=vmem, size = 0x400, scoped, tag = 'output window, operand 0, single buffered']
    #allocation3 [shape = 's32[1]{0}', space=sflag, size = 0x4, scoped, tag = 'scoped memory for deepconvnet_forward.1']
    %7 = vsyncpa [#allocation3], 0
    // Predicated region
    $region2: #{deepconvnet_forward.1} parent=1 // pred_check
      _
    $region3: #{deepconvnet_forward.1} parent=1 // pred_check_branch
      %9 = sbr.rel (0) target = $region5
    $region4: #{deepconvnet_forward.1} parent=1 // pred_region
      _
    $region5: #{deepconvnet_forward.1} parent=1 // pred_fallthru
      _
    // Predicated region
    $region6: #{deepconvnet_forward.1} parent=1 // pred_check
      _
    $region7: #{deepconvnet_forward.1} parent=1 // pred_check_branch
      %11 = sbr.rel (0) target = $region9
    $region8: #{deepconvnet_forward.1} parent=1 // pred_region
      _
    $region9: #{deepconvnet_forward.1} parent=1 // pred_fallthru
      _
    %v12 = vld [vmem:[%s1] sm:$0xff]
    %v13 = vld [vmem:[%s1 + $0x8] sm:$0xff]
    %v14 = vld [vmem:[%s1 + $0x10] sm:$0xff]
    %v15 = vld [vmem:[%s1 + $0x18] sm:$0xff]
    %v16 = vld [vmem:[%s1 + $0x20] sm:$0xff]
    %v17 = vld [vmem:[%s1 + $0x28] sm:$0x1]
    %v18 = vld [vmem:[%s1 + $0x30] sm:$0xff]
    %v19 = vld [vmem:[%s1 + $0x38] sm:$0xff]
    %v20 = vld [vmem:[%s1 + $0x40] sm:$0xf]
    %v21 = vld [vmem:[%s1 + $0x48] sm:$0x1]
    %v22 = vld [vmem:[%s1 + $0x50] sm:$0xff]
    %v23 = vld [vmem:[%s1 + $0x58] sm:$0xff]
    %v24 = vld [vmem:[%s1 + $0x60] sm:$0xff]
    %v25 = vld [vmem:[%s1 + $0x68] sm:$0xff]
    %v26 = vld [vmem:[%s1 + $0x70] sm:$0xff]
    %v27 = vld [vmem:[%s1 + $0x78] sm:$0x1]
    %v28 = vld [vmem:[%s1 + $0x80] sm:$0xff]
    %v29 = vld [vmem:[%s1 + $0x88] sm:$0xff]
    %v30 = vld [vmem:[%s1 + $0x90] sm:$0xff]
    %v31 = vld [vmem:[%s1 + $0x98] sm:$0xff]
    %v32 = vld [vmem:[%s1 + $0xa0] sm:$0x1]
    %v33 = vld [vmem:[%s0] sm:$0xff]
    %v34 = vld [vmem:[%s0 + $0x8] sm:$0xff]
    %v35 = vld [vmem:[%s0 + $0x10] sm:$0xff]
    %v36 = vld [vmem:[%s0 + $0x18] sm:$0xff]
    %v37 = vld [vmem:[%s0 + $0x20] sm:$0xff]
    %v38 = vld [vmem:[%s0 + $0x28] sm:$0xff]
    %s39 = scalar_lea.vmem %s0, 48
    %v40 = vld [vmem:[%s39] sm:$0xff]
    %v41 = vld [vmem:[%s39 + $0x8] sm:$0xff]
    %v42 = vld [vmem:[%s39 + $0x10] sm:$0xff]
    %v43 = vld [vmem:[%s39 + $0x18] sm:$0xff]
    %v44 = vld [vmem:[%s39 + $0x20] sm:$0xff]
    %v45 = vld [vmem:[%s39 + $0x28] sm:$0xff]
    %vm52 = vcmask 1046528
    %v53 = vrot.slane %v33, 1
    %v54 = vrot.slane %v34, 1
    %v55 = vsel %vm52, %v53, %v54
    %v56 = vrot.slane %v35, 1
    %v57 = vsel %vm52, %v54, %v56
    %v58 = vrot.slane %v36, 1
    %v59 = vsel %vm52, %v56, %v58
    %v60 = vrot.slane %v37, 1
    %v61 = vsel %vm52, %v58, %v60
    %v62 = vrot.slane %v38, 1
    %v63 = vsel %vm52, %v60, %v62
    %64 = vrot.lane.b32.xlu0 %v55, 8
    %v65 = vpop.permute.xlu0 %64
    %66 = vrot.lane.b32.xlu0 %v57, 8
    %v67 = vpop.permute.xlu0 %66
    %68 = vrot.lane.b32.xlu0 %v59, 8
    %v69 = vpop.permute.xlu0 %68
    %70 = vrot.lane.b32.xlu0 %v61, 8
    %v71 = vpop.permute.xlu0 %70
    %72 = vrot.lane.b32.xlu0 %v63, 8
    %v73 = vpop.permute.xlu0 %72
    %74 = vrot.lane.b32.xlu0 %v62, 8
    %v75 = vpop.permute.xlu0 %74
    %vm82 = vcmask 1045504
    %v83 = vrot.slane %v33, 2
    %v84 = vrot.slane %v34, 2
    %v85 = vsel %vm82, %v83, %v84
    %v86 = vrot.slane %v35, 2
    %v87 = vsel %vm82, %v84, %v86
    %v88 = vrot.slane %v36, 2
    %v89 = vsel %vm82, %v86, %v88
    %v90 = vrot.slane %v37, 2
    %v91 = vsel %vm82, %v88, %v90
    %v92 = vrot.slane %v38, 2
    %v93 = vsel %vm82, %v90, %v92
    %94 = vrot.lane.b32.xlu0 %v85, 16
    %v95 = vpop.permute.xlu0 %94
    %96 = vrot.lane.b32.xlu0 %v87, 16
    %v97 = vpop.permute.xlu0 %96
    %98 = vrot.lane.b32.xlu0 %v89, 16
    %v99 = vpop.permute.xlu0 %98
    %100 = vrot.lane.b32.xlu0 %v91, 16
    %v101 = vpop.permute.xlu0 %100
    %102 = vrot.lane.b32.xlu0 %v93, 16
    %v103 = vpop.permute.xlu0 %102
    %104 = vrot.lane.b32.xlu0 %v92, 16
    %v105 = vpop.permute.xlu0 %104
    %vm112 = vcmask 1044480
    %v113 = vrot.slane %v33, 3
    %v114 = vrot.slane %v34, 3
    %v115 = vsel %vm112, %v113, %v114
    %v116 = vrot.slane %v35, 3
    %v117 = vsel %vm112, %v114, %v116
    %v118 = vrot.slane %v36, 3
    %v119 = vsel %vm112, %v116, %v118
    %v120 = vrot.slane %v37, 3
    %v121 = vsel %vm112, %v118, %v120
    %v122 = vrot.slane %v38, 3
    %v123 = vsel %vm112, %v120, %v122
    %124 = vrot.lane.b32.xlu0 %v115, 24
    %v125 = vpop.permute.xlu0 %124
    %126 = vrot.lane.b32.xlu0 %v117, 24
    %v127 = vpop.permute.xlu0 %126
    %128 = vrot.lane.b32.xlu0 %v119, 24
    %v129 = vpop.permute.xlu0 %128
    %130 = vrot.lane.b32.xlu0 %v121, 24
    %v131 = vpop.permute.xlu0 %130
    %132 = vrot.lane.b32.xlu0 %v123, 24
    %v133 = vpop.permute.xlu0 %132
    %134 = vrot.lane.b32.xlu0 %v122, 24
    %v135 = vpop.permute.xlu0 %134
    %vm142 = vcmask 1043456
    %v143 = vrot.slane %v33, 4
    %v144 = vrot.slane %v34, 4
    %v145 = vsel %vm142, %v143, %v144
    %v146 = vrot.slane %v35, 4
    %v147 = vsel %vm142, %v144, %v146
    %v148 = vrot.slane %v36, 4
    %v149 = vsel %vm142, %v146, %v148
    %v150 = vrot.slane %v37, 4
    %v151 = vsel %vm142, %v148, %v150
    %v152 = vrot.slane %v38, 4
    %v153 = vsel %vm142, %v150, %v152
    %154 = vrot.lane.b32.xlu0 %v145, 32
    %v155 = vpop.permute.xlu0 %154
    %156 = vrot.lane.b32.xlu0 %v147, 32
    %v157 = vpop.permute.xlu0 %156
    %158 = vrot.lane.b32.xlu0 %v149, 32
    %v159 = vpop.permute.xlu0 %158
    %160 = vrot.lane.b32.xlu0 %v151, 32
    %v161 = vpop.permute.xlu0 %160
    %162 = vrot.lane.b32.xlu0 %v153, 32
    %v163 = vpop.permute.xlu0 %162
    %164 = vrot.lane.b32.xlu0 %v152, 32
    %v165 = vpop.permute.xlu0 %164
    %vm172 = vcmask 64512
    %v173 = vsel %vm172, %v33, %v65
    %v174 = vsel %vm172, %v34, %v67
    %v175 = vsel %vm172, %v35, %v69
    %v176 = vsel %vm172, %v36, %v71
    %v177 = vsel %vm172, %v37, %v73
    %v178 = vsel %vm172, %v38, %v75
    %vm179 = vcmask 130048
    %v180 = vsel %vm179, %v173, %v95
    %v181 = vsel %vm179, %v174, %v97
    %v182 = vsel %vm179, %v175, %v99
    %v183 = vsel %vm179, %v176, %v101
    %v184 = vsel %vm179, %v177, %v103
    %v185 = vsel %vm179, %v178, %v105
    %vm186 = vcmask 195584
    %v187 = vsel %vm186, %v180, %v125
    %v188 = vsel %vm186, %v181, %v127
    %v189 = vsel %vm186, %v182, %v129
    %v190 = vsel %vm186, %v183, %v131
    %v191 = vsel %vm186, %v184, %v133
    %v192 = vsel %vm186, %v185, %v135
    %vm193 = vcmask 261120
    %v194 = vsel %vm193, %v187, %v155
    %v195 = vsel %vm193, %v188, %v157
    %v196 = vsel %vm193, %v189, %v159
    %v197 = vsel %vm193, %v190, %v161
    %v198 = vsel %vm193, %v191, %v163
    %v199 = vsel %vm193, %v192, %v165
    %v206 = vrot.slane %v40, 1
    %v207 = vrot.slane %v41, 1
    %v208 = vsel %vm52, %v206, %v207
    %v209 = vrot.slane %v42, 1
    %v210 = vsel %vm52, %v207, %v209
    %v211 = vrot.slane %v43, 1
    %v212 = vsel %vm52, %v209, %v211
    %v213 = vrot.slane %v44, 1
    %v214 = vsel %vm52, %v211, %v213
    %v215 = vrot.slane %v45, 1
    %v216 = vsel %vm52, %v213, %v215
    %217 = vrot.lane.b32.xlu0 %v208, 8
    %v218 = vpop.permute.xlu0 %217
    %219 = vrot.lane.b32.xlu0 %v210, 8
    %v220 = vpop.permute.xlu0 %219
    %221 = vrot.lane.b32.xlu0 %v212, 8
    %v222 = vpop.permute.xlu0 %221
    %223 = vrot.lane.b32.xlu0 %v214, 8
    %v224 = vpop.permute.xlu0 %223
    %225 = vrot.lane.b32.xlu0 %v216, 8
    %v226 = vpop.permute.xlu0 %225
    %227 = vrot.lane.b32.xlu0 %v215, 8
    %v228 = vpop.permute.xlu0 %227
    %v235 = vrot.slane %v40, 2
    %v236 = vrot.slane %v41, 2
    %v237 = vsel %vm82, %v235, %v236
    %v238 = vrot.slane %v42, 2
    %v239 = vsel %vm82, %v236, %v238
    %v240 = vrot.slane %v43, 2
    %v241 = vsel %vm82, %v238, %v240
    %v242 = vrot.slane %v44, 2
    %v243 = vsel %vm82, %v240, %v242
    %v244 = vrot.slane %v45, 2
    %v245 = vsel %vm82, %v242, %v244
    %246 = vrot.lane.b32.xlu0 %v237, 16
    %v247 = vpop.permute.xlu0 %246
    %248 = vrot.lane.b32.xlu0 %v239, 16
    %v249 = vpop.permute.xlu0 %248
    %250 = vrot.lane.b32.xlu0 %v241, 16
    %v251 = vpop.permute.xlu0 %250
    %252 = vrot.lane.b32.xlu0 %v243, 16
    %v253 = vpop.permute.xlu0 %252
    %254 = vrot.lane.b32.xlu0 %v245, 16
    %v255 = vpop.permute.xlu0 %254
    %256 = vrot.lane.b32.xlu0 %v244, 16
    %v257 = vpop.permute.xlu0 %256
    %v264 = vrot.slane %v40, 3
    %v265 = vrot.slane %v41, 3
    %v266 = vsel %vm112, %v264, %v265
    %v267 = vrot.slane %v42, 3
    %v268 = vsel %vm112, %v265, %v267
    %v269 = vrot.slane %v43, 3
    %v270 = vsel %vm112, %v267, %v269
    %v271 = vrot.slane %v44, 3
    %v272 = vsel %vm112, %v269, %v271
    %v273 = vrot.slane %v45, 3
    %v274 = vsel %vm112, %v271, %v273
    %275 = vrot.lane.b32.xlu0 %v266, 24
    %v276 = vpop.permute.xlu0 %275
    %277 = vrot.lane.b32.xlu0 %v268, 24
    %v278 = vpop.permute.xlu0 %277
    %279 = vrot.lane.b32.xlu0 %v270, 24
    %v280 = vpop.permute.xlu0 %279
    %281 = vrot.lane.b32.xlu0 %v272, 24
    %v282 = vpop.permute.xlu0 %281
    %283 = vrot.lane.b32.xlu0 %v274, 24
    %v284 = vpop.permute.xlu0 %283
    %285 = vrot.lane.b32.xlu0 %v273, 24
    %v286 = vpop.permute.xlu0 %285
    %v293 = vrot.slane %v40, 4
    %v294 = vrot.slane %v41, 4
    %v295 = vsel %vm142, %v293, %v294
    %v296 = vrot.slane %v42, 4
    %v297 = vsel %vm142, %v294, %v296
    %v298 = vrot.slane %v43, 4
    %v299 = vsel %vm142, %v296, %v298
    %v300 = vrot.slane %v44, 4
    %v301 = vsel %vm142, %v298, %v300
    %v302 = vrot.slane %v45, 4
    %v303 = vsel %vm142, %v300, %v302
    %304 = vrot.lane.b32.xlu0 %v295, 32
    %v305 = vpop.permute.xlu0 %304
    %306 = vrot.lane.b32.xlu0 %v297, 32
    %v307 = vpop.permute.xlu0 %306
    %308 = vrot.lane.b32.xlu0 %v299, 32
    %v309 = vpop.permute.xlu0 %308
    %310 = vrot.lane.b32.xlu0 %v301, 32
    %v311 = vpop.permute.xlu0 %310
    %312 = vrot.lane.b32.xlu0 %v303, 32
    %v313 = vpop.permute.xlu0 %312
    %314 = vrot.lane.b32.xlu0 %v302, 32
    %v315 = vpop.permute.xlu0 %314
    %v322 = vsel %vm172, %v40, %v218
    %v323 = vsel %vm172, %v41, %v220
    %v324 = vsel %vm172, %v42, %v222
    %v325 = vsel %vm172, %v43, %v224
    %v326 = vsel %vm172, %v44, %v226
    %v327 = vsel %vm172, %v45, %v228
    %v328 = vsel %vm179, %v322, %v247
    %v329 = vsel %vm179, %v323, %v249
    %v330 = vsel %vm179, %v324, %v251
    %v331 = vsel %vm179, %v325, %v253
    %v332 = vsel %vm179, %v326, %v255
    %v333 = vsel %vm179, %v327, %v257
    %v334 = vsel %vm186, %v328, %v276
    %v335 = vsel %vm186, %v329, %v278
    %v336 = vsel %vm186, %v330, %v280
    %v337 = vsel %vm186, %v331, %v282
    %v338 = vsel %vm186, %v332, %v284
    %v339 = vsel %vm186, %v333, %v286
    %v340 = vsel %vm193, %v334, %v305
    %v341 = vsel %vm193, %v335, %v307
    %v342 = vsel %vm193, %v336, %v309
    %v343 = vsel %vm193, %v337, %v311
    %v344 = vsel %vm193, %v338, %v313
    %v345 = vsel %vm193, %v339, %v315
    %v352 = vrot.slane %v340, 4
    %v353 = vrot.slane %v341, 4
    %v354 = vsel %vm142, %v352, %v353
    %v355 = vrot.slane %v342, 4
    %v356 = vsel %vm142, %v353, %v355
    %v357 = vrot.slane %v343, 4
    %v358 = vsel %vm142, %v355, %v357
    %v359 = vrot.slane %v344, 4
    %v360 = vsel %vm142, %v357, %v359
    %v361 = vrot.slane %v345, 4
    %v362 = vsel %vm142, %v359, %v361
    %v364 = vsel %vm142, %v199, %v352
    %v365 = vlaneseq
    %v366 = vshrl.u32 %v365, 7
    %v367 = vsub.s32 0, %v366
    %v368 = vrot.slane %v17, %v367
    %vm369 = vcmask 326656
    %v371 = vsel %vm369, %v194, 0
    %v374 = vsel %vm369, %v195, 0
    %v377 = vsel %vm369, %v196, 0
    %v380 = vsel %vm369, %v197, 0
    %v383 = vsel %vm369, %v198, 0
    %v386 = vsel %vm369, %v364, 0
    %v388 = vsel %vm369, %v354, 0
    %v390 = vsel %vm369, %v356, 0
    %v392 = vsel %vm369, %v358, 0
    %v394 = vsel %vm369, %v360, 0
    %v396 = vsel %vm369, %v362, 0
    %398 = vmatprep.subr.mxu0 0.0
    %399 = vmatpush1.msra.mxu0 %v12
    %400 = vmatprep.subr.mxu0 0.0
    %401 = vmatpush1.msra.mxu0 %v13
    %402 = vmatprep.subr.mxu0 0.0
    %403 = vmatpush1.msra.mxu0 %v14
    %404 = vmatprep.subr.mxu0 0.0
    %405 = vmatpush1.msra.mxu0 %v15
    %406 = vmatprep.subr.mxu0 0.0
    %407 = vmatpush1.msra.mxu0 %v16
    %408 = vmatprep.subr.mxu0 0.0
    %409 = vmatpush1.msra.mxu0 0.0
    %410 = vmatprep.subr.mxu0 0.0
    %411 = vmatpush1.msra.mxu0 0.0
    %412 = vmatprep.subr.mxu0 0.0
    %413 = vmatpush1.msra.mxu0 0.0
    %414 = vmatprep.subr.mxu0 0.0
    %415 = vmatpush1.msra.mxu0 0.0
    %416 = vmatprep.subr.mxu0 0.0
    %417 = vmatpush1.msra.mxu0 0.0
    %418 = vmatprep.subr.mxu0 0.0
    %419 = vmatpush1.msra.mxu0 0.0
    %420 = vmatprep.subr.mxu0 0.0
    %421 = vmatpush1.msra.mxu0 0.0
    %422 = vmatprep.subr.mxu0 0.0
    %423 = vmatpush1.msra.mxu0 0.0
    %424 = vmatprep.subr.mxu0 0.0
    %425 = vmatpush1.msra.mxu0 0.0
    %426 = vmatprep.subr.mxu0 0.0
    %427 = vmatpush1.msra.mxu0 0.0
    %428 = vmatprep.subr.mxu0 0.0
    %429 = vmatpush1.msra.mxu0 0.0
    %430 = vmatprep.subr.mxu0 0.0
    %431 = vmatpush1.msra.mxu0 0.0
    %432 = vmatprep.subr.mxu0 0.0
    %433 = vmatpush1.msra.mxu0 0.0
    %434 = vmatprep.subr.mxu0 0.0
    %435 = vmatpush1.msra.mxu0 0.0
    %436 = vmatprep.subr.mxu0 0.0
    %437 = vmatpush1.msra.mxu0 0.0
    %438 = vmatprep.subr.mxu0 0.0
    %439 = vmatpush1.msra.mxu0 0.0
    %440 = vmatprep.subr.mxu0 0.0
    %441 = vmatpush1.msra.mxu0 0.0
    %442 = vmatprep.subr.mxu0 0.0
    %443 = vmatpush1.msra.mxu0 0.0
    %444 = vmatprep.subr.mxu0 0.0
    %445 = vmatpush1.msra.mxu0 0.0
    %446 = vmatprep.subr.mxu0 0.0
    %447 = vmatpush1.msra.mxu0 0.0
    %448 = vmatprep.subr.mxu0 0.0
    %449 = vmatpush1.msra.mxu0 0.0
    %450 = vmatprep.subr.mxu0 0.0
    %451 = vmatpush1.msra.mxu0 0.0
    %452 = vmatprep.subr.mxu0 0.0
    %453 = vmatpush1.msra.mxu0 0.0
    %454 = vmatprep.subr.mxu0 0.0
    %455 = vmatpush1.msra.mxu0 0.0
    %456 = vmatprep.subr.mxu0 0.0
    %457 = vmatpush1.msra.mxu0 0.0
    %458 = vmatprep.subr.mxu0 0.0
    %459 = vmatpush1.msra.mxu0 0.0
    %460 = vmatprep.subr.mxu0 0.0
    %461 = vmatpush1.msra.mxu0 0.0
    %462 = vmatprep.mubr.f32.mxu0 0.0
    %463 = vmatmul.mubr.f32.gmra.mrb[0].mxu0 %v371
    %v464 = vpop.f32.mrb[0].mxu0
    %v465 = vadd.f32 %v368, %v464
    %v466 = vpop.f32.mrb[0].mxu0
    %467 = vmatprep.mubr.f32.mxu0 0.0
    %468 = vmatmul.mubr.f32.gmra.mrb[0].mxu0 %v374
    %v469 = vpop.f32.mrb[0].mxu0
    %v470 = vadd.f32 %v368, %v469
    %v471 = vpop.f32.mrb[0].mxu0
    %472 = vmatprep.mubr.f32.mxu0 0.0
    %473 = vmatmul.mubr.f32.gmra.mrb[0].mxu0 %v377
    %v474 = vpop.f32.mrb[0].mxu0
    %v475 = vadd.f32 %v368, %v474
    %v476 = vpop.f32.mrb[0].mxu0
    %477 = vmatprep.mubr.f32.mxu0 0.0
    %478 = vmatmul.mubr.f32.gmra.mrb[0].mxu0 %v380
    %v479 = vpop.f32.mrb[0].mxu0
    %v480 = vadd.f32 %v368, %v479
    %v481 = vpop.f32.mrb[0].mxu0
    %482 = vmatprep.mubr.f32.mxu0 0.0
    %483 = vmatmul.mubr.f32.gmra.mrb[0].mxu0 %v383
    %v484 = vpop.f32.mrb[0].mxu0
    %v485 = vadd.f32 %v368, %v484
    %v486 = vpop.f32.mrb[0].mxu0
    %487 = vmatprep.mubr.f32.mxu0 0.0
    %488 = vmatmul.mubr.f32.gmra.mrb[0].mxu0 %v386
    %v489 = vpop.f32.mrb[0].mxu0
    %v490 = vadd.f32 %v368, %v489
    %v491 = vpop.f32.mrb[0].mxu0
    %492 = vmatprep.mubr.f32.mxu0 0.0
    %493 = vmatmul.mubr.f32.gmra.mrb[0].mxu0 %v388
    %v494 = vpop.f32.mrb[0].mxu0
    %v495 = vadd.f32 %v368, %v494
    %v496 = vpop.f32.mrb[0].mxu0
    %497 = vmatprep.mubr.f32.mxu0 0.0
    %498 = vmatmul.mubr.f32.gmra.mrb[0].mxu0 %v390
    %v499 = vpop.f32.mrb[0].mxu0
    %v500 = vadd.f32 %v368, %v499
    %v501 = vpop.f32.mrb[0].mxu0
    %502 = vmatprep.mubr.f32.mxu0 0.0
    %503 = vmatmul.mubr.f32.gmra.mrb[0].mxu0 %v392
    %v504 = vpop.f32.mrb[0].mxu0
    %v505 = vadd.f32 %v368, %v504
    %v506 = vpop.f32.mrb[0].mxu0
    %507 = vmatprep.mubr.f32.mxu0 0.0
    %508 = vmatmul.mubr.f32.gmra.mrb[0].mxu0 %v394
    %v509 = vpop.f32.mrb[0].mxu0
    %v510 = vadd.f32 %v368, %v509
    %v511 = vpop.f32.mrb[0].mxu0
    %512 = vmatprep.mubr.f32.mxu0 0.0
    %513 = vmatmul.mubr.f32.gmra.mrb[0].mxu0 %v396
    %v514 = vpop.f32.mrb[0].mxu0
    %v515 = vadd.f32 %v368, %v514
    %v516 = vpop.f32.mrb[0].mxu0
    %517 = vdwg.mxu0
    %vm518 = vcmp.gt.f32.partialorder %v465, 0.0
    %vm519 = vcmp.gt.f32.partialorder %v470, 0.0
    %vm520 = vcmp.gt.f32.partialorder %v475, 0.0
    %vm521 = vcmp.gt.f32.partialorder %v480, 0.0
    %vm522 = vcmp.gt.f32.partialorder %v485, 0.0
    %vm523 = vcmp.gt.f32.partialorder %v490, 0.0
    %vm524 = vcmp.gt.f32.partialorder %v495, 0.0
    %vm525 = vcmp.gt.f32.partialorder %v500, 0.0
    %vm526 = vcmp.gt.f32.partialorder %v505, 0.0
    %vm527 = vcmp.gt.f32.partialorder %v510, 0.0
    %vm528 = vcmp.gt.f32.partialorder %v515, 0.0
    %v529 = vmin.f32 %v465, 0.0
    %v530 = vmin.f32 %v470, 0.0
    %v531 = vmin.f32 %v475, 0.0
    %v532 = vmin.f32 %v480, 0.0
    %v533 = vmin.f32 %v485, 0.0
    %v534 = vmin.f32 %v490, 0.0
    %v535 = vmin.f32 %v495, 0.0
    %v536 = vmin.f32 %v500, 0.0
    %v537 = vmin.f32 %v505, 0.0
    %v538 = vmin.f32 %v510, 0.0
    %v539 = vmin.f32 %v515, 0.0
    %v540 = vmul.f32 %v529, 1.442695
    %v541 = vpow.pop %v540
    %v542 = vmul.f32 %v530, 1.442695
    %v543 = vpow.pop %v542
    %v544 = vmul.f32 %v531, 1.442695
    %v545 = vpow.pop %v544
    %v546 = vmul.f32 %v532, 1.442695
    %v547 = vpow.pop %v546
    %v548 = vmul.f32 %v533, 1.442695
    %v549 = vpow.pop %v548
    %v550 = vmul.f32 %v534, 1.442695
    %v551 = vpow.pop %v550
    %v552 = vmul.f32 %v535, 1.442695
    %v553 = vpow.pop %v552
    %v554 = vmul.f32 %v536, 1.442695
    %v555 = vpow.pop %v554
    %v556 = vmul.f32 %v537, 1.442695
    %v557 = vpow.pop %v556
    %v558 = vmul.f32 %v538, 1.442695
    %v559 = vpow.pop %v558
    %v560 = vmul.f32 %v539, 1.442695
    %v561 = vpow.pop %v560
    %v562 = vsub.f32 %v541, 1.0
    %v563 = vsub.f32 %v543, 1.0
    %v564 = vsub.f32 %v545, 1.0
    %v565 = vsub.f32 %v547, 1.0
    %v566 = vsub.f32 %v549, 1.0
    %v567 = vsub.f32 %v551, 1.0
    %v568 = vsub.f32 %v553, 1.0
    %v569 = vsub.f32 %v555, 1.0
    %v570 = vsub.f32 %v557, 1.0
    %v571 = vsub.f32 %v559, 1.0
    %v572 = vsub.f32 %v561, 1.0
    %v573 = vsel %vm518, %v465, %v562
    %v574 = vsel %vm519, %v470, %v563
    %v575 = vsel %vm520, %v475, %v564
    %v576 = vsel %vm521, %v480, %v565
    %v577 = vsel %vm522, %v485, %v566
    %v578 = vsel %vm523, %v490, %v567
    %v579 = vsel %vm524, %v495, %v568
    %v580 = vsel %vm525, %v500, %v569
    %v581 = vsel %vm526, %v505, %v570
    %v582 = vsel %vm527, %v510, %v571
    %v583 = vsel %vm528, %v515, %v572
    %v590 = vcombine.high %v573, %v573
    %v592 = vunpack.c.l.s4 1983009808
    %v593 = vunpack.c.0.s8 %v592
    %v594 = vlaneseq
    %v595 = vshrl.u32 %v594, 7
    %v596 = vsub.s32 %v593, %v595
    %v597 = vrot.slane %v573, %v596
    %v599 = vunpack.c.l.s4 1983009808
    %v600 = vunpack.c.0.s8 %v599
    %v601 = vlaneseq
    %v602 = vshrl.u32 %v601, 7
    %v603 = vsub.s32 %v600, %v602
    %v604 = vrot.slane %v590, %v603
    %v605 = vcombine.high %v597, %v597
    %v606 = vcombine.high %v604, %v604
    %v607 = vcombine.high %v574, %v574
    %v609 = vunpack.c.l.s4 1983009808
    %v610 = vunpack.c.0.s8 %v609
    %v611 = vlaneseq
    %v612 = vshrl.u32 %v611, 7
    %v613 = vsub.s32 %v610, %v612
    %v614 = vrot.slane %v574, %v613
    %v616 = vunpack.c.l.s4 1983009808
    %v617 = vunpack.c.0.s8 %v616
    %v618 = vlaneseq
    %v619 = vshrl.u32 %v618, 7
    %v620 = vsub.s32 %v617, %v619
    %v621 = vrot.slane %v607, %v620
    %v622 = vcombine.high %v614, %v614
    %v623 = vcombine.high %v621, %v621
    %v624 = vcombine.high %v575, %v575
    %v626 = vunpack.c.l.s4 1983009808
    %v627 = vunpack.c.0.s8 %v626
    %v628 = vlaneseq
    %v629 = vshrl.u32 %v628, 7
    %v630 = vsub.s32 %v627, %v629
    %v631 = vrot.slane %v575, %v630
    %v633 = vunpack.c.l.s4 1983009808
    %v634 = vunpack.c.0.s8 %v633
    %v635 = vlaneseq
    %v636 = vshrl.u32 %v635, 7
    %v637 = vsub.s32 %v634, %v636
    %v638 = vrot.slane %v624, %v637
    %v639 = vcombine.high %v631, %v631
    %v640 = vcombine.high %v638, %v638
    %v641 = vcombine.high %v576, %v576
    %v643 = vunpack.c.l.s4 1983009808
    %v644 = vunpack.c.0.s8 %v643
    %v645 = vlaneseq
    %v646 = vshrl.u32 %v645, 7
    %v647 = vsub.s32 %v644, %v646
    %v648 = vrot.slane %v576, %v647
    %v650 = vunpack.c.l.s4 1983009808
    %v651 = vunpack.c.0.s8 %v650
    %v652 = vlaneseq
    %v653 = vshrl.u32 %v652, 7
    %v654 = vsub.s32 %v651, %v653
    %v655 = vrot.slane %v641, %v654
    %v656 = vcombine.high %v648, %v648
    %v657 = vcombine.high %v655, %v655
    %v658 = vcombine.high %v577, %v577
    %v660 = vunpack.c.l.s4 1983009808
    %v661 = vunpack.c.0.s8 %v660
    %v662 = vlaneseq
    %v663 = vshrl.u32 %v662, 7
    %v664 = vsub.s32 %v661, %v663
    %v665 = vrot.slane %v577, %v664
    %v667 = vunpack.c.l.s4 1983009808
    %v668 = vunpack.c.0.s8 %v667
    %v669 = vlaneseq
    %v670 = vshrl.u32 %v669, 7
    %v671 = vsub.s32 %v668, %v670
    %v672 = vrot.slane %v658, %v671
    %v673 = vcombine.high %v665, %v665
    %v674 = vcombine.high %v672, %v672
    %v676 = vunpack.c.l.s4 1983009808
    %v677 = vunpack.c.0.s8 %v676
    %v678 = vlaneseq
    %v679 = vshrl.u32 %v678, 7
    %v680 = vsub.s32 %v677, %v679
    %v681 = vrot.slane %v578, %v680
    %v682 = vcombine.high %v681, %v681
    %vm705 = vcmask 25600
    %v706 = vsel %vm705, %v597, -inf
    %v707 = vrot.slane %v706, 4
    %v708 = vmax.f32 %v706, %v707
    %v709 = vrot.slane %v708, 2
    %v710 = vmax.f32 %v708, %v709
    %v711 = vrot.slane %v710, 1
    %v712 = vmax.f32 %v710, %v711
    %v713 = vsel %vm705, %v605, -inf
    %v714 = vrot.slane %v713, 4
    %v715 = vmax.f32 %v713, %v714
    %v716 = vrot.slane %v715, 2
    %v717 = vmax.f32 %v715, %v716
    %v718 = vrot.slane %v717, 1
    %v719 = vmax.f32 %v717, %v718
    %v720 = vsel %vm705, %v604, -inf
    %v721 = vrot.slane %v720, 4
    %v722 = vmax.f32 %v720, %v721
    %v723 = vrot.slane %v722, 2
    %v724 = vmax.f32 %v722, %v723
    %v725 = vrot.slane %v724, 1
    %v726 = vmax.f32 %v724, %v725
    %v727 = vsel %vm705, %v606, -inf
    %v728 = vrot.slane %v727, 4
    %v729 = vmax.f32 %v727, %v728
    %v730 = vrot.slane %v729, 2
    %v731 = vmax.f32 %v729, %v730
    %v732 = vrot.slane %v731, 1
    %v733 = vmax.f32 %v731, %v732
    %v734 = vsel %vm705, %v614, -inf
    %v735 = vrot.slane %v734, 4
    %v736 = vmax.f32 %v734, %v735
    %v737 = vrot.slane %v736, 2
    %v738 = vmax.f32 %v736, %v737
    %v739 = vrot.slane %v738, 1
    %v740 = vmax.f32 %v738, %v739
    %v741 = vsel %vm705, %v622, -inf
    %v742 = vrot.slane %v741, 4
    %v743 = vmax.f32 %v741, %v742
    %v744 = vrot.slane %v743, 2
    %v745 = vmax.f32 %v743, %v744
    %v746 = vrot.slane %v745, 1
    %v747 = vmax.f32 %v745, %v746
    %v748 = vsel %vm705, %v621, -inf
    %v749 = vrot.slane %v748, 4
    %v750 = vmax.f32 %v748, %v749
    %v751 = vrot.slane %v750, 2
    %v752 = vmax.f32 %v750, %v751
    %v753 = vrot.slane %v752, 1
    %v754 = vmax.f32 %v752, %v753
    %v755 = vsel %vm705, %v623, -inf
    %v756 = vrot.slane %v755, 4
    %v757 = vmax.f32 %v755, %v756
    %v758 = vrot.slane %v757, 2
    %v759 = vmax.f32 %v757, %v758
    %v760 = vrot.slane %v759, 1
    %v761 = vmax.f32 %v759, %v760
    %v762 = vsel %vm705, %v631, -inf
    %v763 = vrot.slane %v762, 4
    %v764 = vmax.f32 %v762, %v763
    %v765 = vrot.slane %v764, 2
    %v766 = vmax.f32 %v764, %v765
    %v767 = vrot.slane %v766, 1
    %v768 = vmax.f32 %v766, %v767
    %v769 = vsel %vm705, %v639, -inf
    %v770 = vrot.slane %v769, 4
    %v771 = vmax.f32 %v769, %v770
    %v772 = vrot.slane %v771, 2
    %v773 = vmax.f32 %v771, %v772
    %v774 = vrot.slane %v773, 1
    %v775 = vmax.f32 %v773, %v774
    %v776 = vsel %vm705, %v638, -inf
    %v777 = vrot.slane %v776, 4
    %v778 = vmax.f32 %v776, %v777
    %v779 = vrot.slane %v778, 2
    %v780 = vmax.f32 %v778, %v779
    %v781 = vrot.slane %v780, 1
    %v782 = vmax.f32 %v780, %v781
    %v783 = vsel %vm705, %v640, -inf
    %v784 = vrot.slane %v783, 4
    %v785 = vmax.f32 %v783, %v784
    %v786 = vrot.slane %v785, 2
    %v787 = vmax.f32 %v785, %v786
    %v788 = vrot.slane %v787, 1
    %v789 = vmax.f32 %v787, %v788
    %v790 = vsel %vm705, %v648, -inf
    %v791 = vrot.slane %v790, 4
    %v792 = vmax.f32 %v790, %v791
    %v793 = vrot.slane %v792, 2
    %v794 = vmax.f32 %v792, %v793
    %v795 = vrot.slane %v794, 1
    %v796 = vmax.f32 %v794, %v795
    %v797 = vsel %vm705, %v656, -inf
    %v798 = vrot.slane %v797, 4
    %v799 = vmax.f32 %v797, %v798
    %v800 = vrot.slane %v799, 2
    %v801 = vmax.f32 %v799, %v800
    %v802 = vrot.slane %v801, 1
    %v803 = vmax.f32 %v801, %v802
    %v804 = vsel %vm705, %v655, -inf
    %v805 = vrot.slane %v804, 4
    %v806 = vmax.f32 %v804, %v805
    %v807 = vrot.slane %v806, 2
    %v808 = vmax.f32 %v806, %v807
    %v809 = vrot.slane %v808, 1
    %v810 = vmax.f32 %v808, %v809
    %v811 = vsel %vm705, %v657, -inf
    %v812 = vrot.slane %v811, 4
    %v813 = vmax.f32 %v811, %v812
    %v814 = vrot.slane %v813, 2
    %v815 = vmax.f32 %v813, %v814
    %v816 = vrot.slane %v815, 1
    %v817 = vmax.f32 %v815, %v816
    %v818 = vsel %vm705, %v665, -inf
    %v819 = vrot.slane %v818, 4
    %v820 = vmax.f32 %v818, %v819
    %v821 = vrot.slane %v820, 2
    %v822 = vmax.f32 %v820, %v821
    %v823 = vrot.slane %v822, 1
    %v824 = vmax.f32 %v822, %v823
    %v825 = vsel %vm705, %v673, -inf
    %v826 = vrot.slane %v825, 4
    %v827 = vmax.f32 %v825, %v826
    %v828 = vrot.slane %v827, 2
    %v829 = vmax.f32 %v827, %v828
    %v830 = vrot.slane %v829, 1
    %v831 = vmax.f32 %v829, %v830
    %v832 = vsel %vm705, %v672, -inf
    %v833 = vrot.slane %v832, 4
    %v834 = vmax.f32 %v832, %v833
    %v835 = vrot.slane %v834, 2
    %v836 = vmax.f32 %v834, %v835
    %v837 = vrot.slane %v836, 1
    %v838 = vmax.f32 %v836, %v837
    %v839 = vsel %vm705, %v674, -inf
    %v840 = vrot.slane %v839, 4
    %v841 = vmax.f32 %v839, %v840
    %v842 = vrot.slane %v841, 2
    %v843 = vmax.f32 %v841, %v842
    %v844 = vrot.slane %v843, 1
    %v845 = vmax.f32 %v843, %v844
    %v846 = vsel %vm705, %v681, -inf
    %v847 = vrot.slane %v846, 4
    %v848 = vmax.f32 %v846, %v847
    %v849 = vrot.slane %v848, 2
    %v850 = vmax.f32 %v848, %v849
    %v851 = vrot.slane %v850, 1
    %v852 = vmax.f32 %v850, %v851
    %v853 = vsel %vm705, %v682, -inf
    %v854 = vrot.slane %v853, 4
    %v855 = vmax.f32 %v853, %v854
    %v856 = vrot.slane %v855, 2
    %v857 = vmax.f32 %v855, %v856
    %v858 = vrot.slane %v857, 1
    %v859 = vmax.f32 %v857, %v858
    %v865 = vcombine.high %v578, %v578
    %v867 = vunpack.c.l.s4 1983009808
    %v868 = vunpack.c.0.s8 %v867
    %v869 = vlaneseq
    %v870 = vshrl.u32 %v869, 7
    %v871 = vsub.s32 %v868, %v870
    %v872 = vrot.slane %v865, %v871
    %v873 = vcombine.high %v872, %v872
    %v874 = vcombine.high %v579, %v579
    %v876 = vunpack.c.l.s4 1983009808
    %v877 = vunpack.c.0.s8 %v876
    %v878 = vlaneseq
    %v879 = vshrl.u32 %v878, 7
    %v880 = vsub.s32 %v877, %v879
    %v881 = vrot.slane %v579, %v880
    %v883 = vunpack.c.l.s4 1983009808
    %v884 = vunpack.c.0.s8 %v883
    %v885 = vlaneseq
    %v886 = vshrl.u32 %v885, 7
    %v887 = vsub.s32 %v884, %v886
    %v888 = vrot.slane %v874, %v887
    %v889 = vcombine.high %v881, %v881
    %v890 = vcombine.high %v888, %v888
    %v891 = vcombine.high %v580, %v580
    %v893 = vunpack.c.l.s4 1983009808
    %v894 = vunpack.c.0.s8 %v893
    %v895 = vlaneseq
    %v896 = vshrl.u32 %v895, 7
    %v897 = vsub.s32 %v894, %v896
    %v898 = vrot.slane %v580, %v897
    %v900 = vunpack.c.l.s4 1983009808
    %v901 = vunpack.c.0.s8 %v900
    %v902 = vlaneseq
    %v903 = vshrl.u32 %v902, 7
    %v904 = vsub.s32 %v901, %v903
    %v905 = vrot.slane %v891, %v904
    %v906 = vcombine.high %v898, %v898
    %v907 = vcombine.high %v905, %v905
    %v908 = vcombine.high %v581, %v581
    %v910 = vunpack.c.l.s4 1983009808
    %v911 = vunpack.c.0.s8 %v910
    %v912 = vlaneseq
    %v913 = vshrl.u32 %v912, 7
    %v914 = vsub.s32 %v911, %v913
    %v915 = vrot.slane %v581, %v914
    %v917 = vunpack.c.l.s4 1983009808
    %v918 = vunpack.c.0.s8 %v917
    %v919 = vlaneseq
    %v920 = vshrl.u32 %v919, 7
    %v921 = vsub.s32 %v918, %v920
    %v922 = vrot.slane %v908, %v921
    %v923 = vcombine.high %v915, %v915
    %v924 = vcombine.high %v922, %v922
    %v925 = vcombine.high %v582, %v582
    %v927 = vunpack.c.l.s4 1983009808
    %v928 = vunpack.c.0.s8 %v927
    %v929 = vlaneseq
    %v930 = vshrl.u32 %v929, 7
    %v931 = vsub.s32 %v928, %v930
    %v932 = vrot.slane %v582, %v931
    %v934 = vunpack.c.l.s4 1983009808
    %v935 = vunpack.c.0.s8 %v934
    %v936 = vlaneseq
    %v937 = vshrl.u32 %v936, 7
    %v938 = vsub.s32 %v935, %v937
    %v939 = vrot.slane %v925, %v938
    %v940 = vcombine.high %v932, %v932
    %v941 = vcombine.high %v939, %v939
    %v942 = vcombine.high %v583, %v583
    %v944 = vunpack.c.l.s4 1983009808
    %v945 = vunpack.c.0.s8 %v944
    %v946 = vlaneseq
    %v947 = vshrl.u32 %v946, 7
    %v948 = vsub.s32 %v945, %v947
    %v949 = vrot.slane %v583, %v948
    %v951 = vunpack.c.l.s4 1983009808
    %v952 = vunpack.c.0.s8 %v951
    %v953 = vlaneseq
    %v954 = vshrl.u32 %v953, 7
    %v955 = vsub.s32 %v952, %v954
    %v956 = vrot.slane %v942, %v955
    %v957 = vcombine.high %v949, %v949
    %v958 = vcombine.high %v956, %v956
    %v981 = vsel %vm705, %v872, -inf
    %v982 = vrot.slane %v981, 4
    %v983 = vmax.f32 %v981, %v982
    %v984 = vrot.slane %v983, 2
    %v985 = vmax.f32 %v983, %v984
    %v986 = vrot.slane %v985, 1
    %v987 = vmax.f32 %v985, %v986
    %v988 = vsel %vm705, %v873, -inf
    %v989 = vrot.slane %v988, 4
    %v990 = vmax.f32 %v988, %v989
    %v991 = vrot.slane %v990, 2
    %v992 = vmax.f32 %v990, %v991
    %v993 = vrot.slane %v992, 1
    %v994 = vmax.f32 %v992, %v993
    %v995 = vsel %vm705, %v881, -inf
    %v996 = vrot.slane %v995, 4
    %v997 = vmax.f32 %v995, %v996
    %v998 = vrot.slane %v997, 2
    %v999 = vmax.f32 %v997, %v998
    %v1000 = vrot.slane %v999, 1
    %v1001 = vmax.f32 %v999, %v1000
    %v1002 = vsel %vm705, %v889, -inf
    %v1003 = vrot.slane %v1002, 4
    %v1004 = vmax.f32 %v1002, %v1003
    %v1005 = vrot.slane %v1004, 2
    %v1006 = vmax.f32 %v1004, %v1005
    %v1007 = vrot.slane %v1006, 1
    %v1008 = vmax.f32 %v1006, %v1007
    %v1009 = vsel %vm705, %v888, -inf
    %v1010 = vrot.slane %v1009, 4
    %v1011 = vmax.f32 %v1009, %v1010
    %v1012 = vrot.slane %v1011, 2
    %v1013 = vmax.f32 %v1011, %v1012
    %v1014 = vrot.slane %v1013, 1
    %v1015 = vmax.f32 %v1013, %v1014
    %v1016 = vsel %vm705, %v890, -inf
    %v1017 = vrot.slane %v1016, 4
    %v1018 = vmax.f32 %v1016, %v1017
    %v1019 = vrot.slane %v1018, 2
    %v1020 = vmax.f32 %v1018, %v1019
    %v1021 = vrot.slane %v1020, 1
    %v1022 = vmax.f32 %v1020, %v1021
    %v1023 = vsel %vm705, %v898, -inf
    %v1024 = vrot.slane %v1023, 4
    %v1025 = vmax.f32 %v1023, %v1024
    %v1026 = vrot.slane %v1025, 2
    %v1027 = vmax.f32 %v1025, %v1026
    %v1028 = vrot.slane %v1027, 1
    %v1029 = vmax.f32 %v1027, %v1028
    %v1030 = vsel %vm705, %v906, -inf
    %v1031 = vrot.slane %v1030, 4
    %v1032 = vmax.f32 %v1030, %v1031
    %v1033 = vrot.slane %v1032, 2
    %v1034 = vmax.f32 %v1032, %v1033
    %v1035 = vrot.slane %v1034, 1
    %v1036 = vmax.f32 %v1034, %v1035
    %v1037 = vsel %vm705, %v905, -inf
    %v1038 = vrot.slane %v1037, 4
    %v1039 = vmax.f32 %v1037, %v1038
    %v1040 = vrot.slane %v1039, 2
    %v1041 = vmax.f32 %v1039, %v1040
    %v1042 = vrot.slane %v1041, 1
    %v1043 = vmax.f32 %v1041, %v1042
    %v1044 = vsel %vm705, %v907, -inf
    %v1045 = vrot.slane %v1044, 4
    %v1046 = vmax.f32 %v1044, %v1045
    %v1047 = vrot.slane %v1046, 2
    %v1048 = vmax.f32 %v1046, %v1047
    %v1049 = vrot.slane %v1048, 1
    %v1050 = vmax.f32 %v1048, %v1049
    %v1051 = vsel %vm705, %v915, -inf
    %v1052 = vrot.slane %v1051, 4
    %v1053 = vmax.f32 %v1051, %v1052
    %v1054 = vrot.slane %v1053, 2
    %v1055 = vmax.f32 %v1053, %v1054
    %v1056 = vrot.slane %v1055, 1
    %v1057 = vmax.f32 %v1055, %v1056
    %v1058 = vsel %vm705, %v923, -inf
    %v1059 = vrot.slane %v1058, 4
    %v1060 = vmax.f32 %v1058, %v1059
    %v1061 = vrot.slane %v1060, 2
    %v1062 = vmax.f32 %v1060, %v1061
    %v1063 = vrot.slane %v1062, 1
    %v1064 = vmax.f32 %v1062, %v1063
    %v1065 = vsel %vm705, %v922, -inf
    %v1066 = vrot.slane %v1065, 4
    %v1067 = vmax.f32 %v1065, %v1066
    %v1068 = vrot.slane %v1067, 2
    %v1069 = vmax.f32 %v1067, %v1068
    %v1070 = vrot.slane %v1069, 1
    %v1071 = vmax.f32 %v1069, %v1070
    %v1072 = vsel %vm705, %v924, -inf
    %v1073 = vrot.slane %v1072, 4
    %v1074 = vmax.f32 %v1072, %v1073
    %v1075 = vrot.slane %v1074, 2
    %v1076 = vmax.f32 %v1074, %v1075
    %v1077 = vrot.slane %v1076, 1
    %v1078 = vmax.f32 %v1076, %v1077
    %v1079 = vsel %vm705, %v932, -inf
    %v1080 = vrot.slane %v1079, 4
    %v1081 = vmax.f32 %v1079, %v1080
    %v1082 = vrot.slane %v1081, 2
    %v1083 = vmax.f32 %v1081, %v1082
    %v1084 = vrot.slane %v1083, 1
    %v1085 = vmax.f32 %v1083, %v1084
    %v1086 = vsel %vm705, %v940, -inf
    %v1087 = vrot.slane %v1086, 4
    %v1088 = vmax.f32 %v1086, %v1087
    %v1089 = vrot.slane %v1088, 2
    %v1090 = vmax.f32 %v1088, %v1089
    %v1091 = vrot.slane %v1090, 1
    %v1092 = vmax.f32 %v1090, %v1091
    %v1093 = vsel %vm705, %v939, -inf
    %v1094 = vrot.slane %v1093, 4
    %v1095 = vmax.f32 %v1093, %v1094
    %v1096 = vrot.slane %v1095, 2
    %v1097 = vmax.f32 %v1095, %v1096
    %v1098 = vrot.slane %v1097, 1
    %v1099 = vmax.f32 %v1097, %v1098
    %v1100 = vsel %vm705, %v941, -inf
    %v1101 = vrot.slane %v1100, 4
    %v1102 = vmax.f32 %v1100, %v1101
    %v1103 = vrot.slane %v1102, 2
    %v1104 = vmax.f32 %v1102, %v1103
    %v1105 = vrot.slane %v1104, 1
    %v1106 = vmax.f32 %v1104, %v1105
    %v1107 = vsel %vm705, %v949, -inf
    %v1108 = vrot.slane %v1107, 4
    %v1109 = vmax.f32 %v1107, %v1108
    %v1110 = vrot.slane %v1109, 2
    %v1111 = vmax.f32 %v1109, %v1110
    %v1112 = vrot.slane %v1111, 1
    %v1113 = vmax.f32 %v1111, %v1112
    %v1114 = vsel %vm705, %v957, -inf
    %v1115 = vrot.slane %v1114, 4
    %v1116 = vmax.f32 %v1114, %v1115
    %v1117 = vrot.slane %v1116, 2
    %v1118 = vmax.f32 %v1116, %v1117
    %v1119 = vrot.slane %v1118, 1
    %v1120 = vmax.f32 %v1118, %v1119
    %v1121 = vsel %vm705, %v956, -inf
    %v1122 = vrot.slane %v1121, 4
    %v1123 = vmax.f32 %v1121, %v1122
    %v1124 = vrot.slane %v1123, 2
    %v1125 = vmax.f32 %v1123, %v1124
    %v1126 = vrot.slane %v1125, 1
    %v1127 = vmax.f32 %v1125, %v1126
    %v1128 = vsel %vm705, %v958, -inf
    %v1129 = vrot.slane %v1128, 4
    %v1130 = vmax.f32 %v1128, %v1129
    %v1131 = vrot.slane %v1130, 2
    %v1132 = vmax.f32 %v1130, %v1131
    %v1133 = vrot.slane %v1132, 1
    %v1134 = vmax.f32 %v1132, %v1133
    %vm1153 = vcmask 1041409
    %v1154 = vsel %vm1153, %v719, %v712
    %vm1155 = vcmask 1042434
    %v1156 = vsel %vm1155, %v726, %v1154
    %vm1157 = vcmask 1043459
    %v1158 = vsel %vm1157, %v733, %v1156
    %vm1159 = vcmask 1044484
    %v1160 = vsel %vm1159, %v740, %v1158
    %vm1161 = vcmask 1045509
    %v1162 = vsel %vm1161, %v747, %v1160
    %vm1163 = vcmask 1046534
    %v1164 = vsel %vm1163, %v754, %v1162
    %vm1165 = vcmask 1047559
    %v1166 = vsel %vm1165, %v761, %v1164
    %v1167 = vsel %vm1153, %v775, %v768
    %v1168 = vsel %vm1155, %v782, %v1167
    %v1169 = vsel %vm1157, %v789, %v1168
    %v1170 = vsel %vm1159, %v796, %v1169
    %v1171 = vsel %vm1161, %v803, %v1170
    %v1172 = vsel %vm1163, %v810, %v1171
    %v1173 = vsel %vm1165, %v817, %v1172
    %v1174 = vsel %vm1153, %v831, %v824
    %v1179 = vsel %vm1153, %v726, %v719
    %v1180 = vsel %vm1155, %v733, %v1179
    %v1181 = vsel %vm1157, %v740, %v1180
    %v1182 = vsel %vm1159, %v747, %v1181
    %v1183 = vsel %vm1161, %v754, %v1182
    %v1184 = vsel %vm1163, %v761, %v1183
    %v1185 = vsel %vm1165, %v768, %v1184
    %v1186 = vsel %vm1153, %v782, %v775
    %v1187 = vsel %vm1155, %v789, %v1186
    %v1188 = vsel %vm1157, %v796, %v1187
    %v1189 = vsel %vm1159, %v803, %v1188
    %v1190 = vsel %vm1161, %v810, %v1189
    %v1191 = vsel %vm1163, %v817, %v1190
    %v1192 = vsel %vm1165, %v824, %v1191
    %v1193 = vsel %vm1153, %v838, %v831
    %1194 = vrot.lane.b32.xlu0 %v1185, 4
    %v1195 = vpop.permute.xlu0 %1194
    %1196 = vrot.lane.b32.xlu0 %v1192, 4
    %v1197 = vpop.permute.xlu0 %1196
    %1198 = vrot.lane.b32.xlu0 %v1193, 4
    %v1199 = vpop.permute.xlu0 %1198
    %v1204 = vsel %vm1153, %v733, %v726
    %v1205 = vsel %vm1155, %v740, %v1204
    %v1206 = vsel %vm1157, %v747, %v1205
    %v1207 = vsel %vm1159, %v754, %v1206
    %v1208 = vsel %vm1161, %v761, %v1207
    %v1209 = vsel %vm1163, %v768, %v1208
    %v1210 = vsel %vm1165, %v775, %v1209
    %v1211 = vsel %vm1153, %v789, %v782
    %v1212 = vsel %vm1155, %v796, %v1211
    %v1213 = vsel %vm1157, %v803, %v1212
    %v1214 = vsel %vm1159, %v810, %v1213
    %v1215 = vsel %vm1161, %v817, %v1214
    %v1216 = vsel %vm1163, %v824, %v1215
    %v1217 = vsel %vm1165, %v831, %v1216
    %v1218 = vsel %vm1153, %v845, %v838
    %1219 = vrot.lane.b32.xlu0 %v1210, 8
    %v1220 = vpop.permute.xlu0 %1219
    %1221 = vrot.lane.b32.xlu0 %v1217, 8
    %v1222 = vpop.permute.xlu0 %1221
    %1223 = vrot.lane.b32.xlu0 %v1218, 8
    %v1224 = vpop.permute.xlu0 %1223
    %v1229 = vsel %vm1153, %v740, %v733
    %v1230 = vsel %vm1155, %v747, %v1229
    %v1231 = vsel %vm1157, %v754, %v1230
    %v1232 = vsel %vm1159, %v761, %v1231
    %v1233 = vsel %vm1161, %v768, %v1232
    %v1234 = vsel %vm1163, %v775, %v1233
    %v1235 = vsel %vm1165, %v782, %v1234
    %v1236 = vsel %vm1153, %v796, %v789
    %v1237 = vsel %vm1155, %v803, %v1236
    %v1238 = vsel %vm1157, %v810, %v1237
    %v1239 = vsel %vm1159, %v817, %v1238
    %v1240 = vsel %vm1161, %v824, %v1239
    %v1241 = vsel %vm1163, %v831, %v1240
    %v1242 = vsel %vm1165, %v838, %v1241
    %v1243 = vsel %vm1153, %v852, %v845
    %1244 = vrot.lane.b32.xlu0 %v1235, 12
    %v1245 = vpop.permute.xlu0 %1244
    %1246 = vrot.lane.b32.xlu0 %v1242, 12
    %v1247 = vpop.permute.xlu0 %1246
    %1248 = vrot.lane.b32.xlu0 %v1243, 12
    %v1249 = vpop.permute.xlu0 %1248
    %v1254 = vsel %vm1153, %v747, %v740
    %v1255 = vsel %vm1155, %v754, %v1254
    %v1256 = vsel %vm1157, %v761, %v1255
    %v1257 = vsel %vm1159, %v768, %v1256
    %v1258 = vsel %vm1161, %v775, %v1257
    %v1259 = vsel %vm1163, %v782, %v1258
    %v1260 = vsel %vm1165, %v789, %v1259
    %v1261 = vsel %vm1153, %v803, %v796
    %v1262 = vsel %vm1155, %v810, %v1261
    %v1263 = vsel %vm1157, %v817, %v1262
    %v1264 = vsel %vm1159, %v824, %v1263
    %v1265 = vsel %vm1161, %v831, %v1264
    %v1266 = vsel %vm1163, %v838, %v1265
    %v1267 = vsel %vm1165, %v845, %v1266
    %v1268 = vsel %vm1153, %v859, %v852
    %1269 = vrot.lane.b32.xlu0 %v1260, 16
    %v1270 = vpop.permute.xlu0 %1269
    %1271 = vrot.lane.b32.xlu0 %v1267, 16
    %v1272 = vpop.permute.xlu0 %1271
    %1273 = vrot.lane.b32.xlu0 %v1268, 16
    %v1274 = vpop.permute.xlu0 %1273
    %vm1278 = vcmask 31744
    %v1279 = vsel %vm1278, %v1166, %v1195
    %v1280 = vsel %vm1278, %v1173, %v1197
    %v1281 = vsel %vm1278, %v1174, %v1199
    %v1282 = vsel %vm172, %v1279, %v1220
    %v1283 = vsel %vm172, %v1280, %v1222
    %v1284 = vsel %vm172, %v1281, %v1224
    %vm1285 = vcmask 97280
    %v1286 = vsel %vm1285, %v1282, %v1245
    %v1287 = vsel %vm1285, %v1283, %v1247
    %v1288 = vsel %vm1285, %v1284, %v1249
    %v1289 = vsel %vm179, %v1286, %v1270
    %v1290 = vsel %vm179, %v1287, %v1272
    %v1291 = vsel %vm179, %v1288, %v1274
    %v1310 = vsel %vm1153, %v994, %v987
    %v1311 = vsel %vm1155, %v1001, %v1310
    %v1312 = vsel %vm1157, %v1008, %v1311
    %v1313 = vsel %vm1159, %v1015, %v1312
    %v1314 = vsel %vm1161, %v1022, %v1313
    %v1315 = vsel %vm1163, %v1029, %v1314
    %v1316 = vsel %vm1165, %v1036, %v1315
    %v1317 = vsel %vm1153, %v1050, %v1043
    %v1318 = vsel %vm1155, %v1057, %v1317
    %v1319 = vsel %vm1157, %v1064, %v1318
    %v1320 = vsel %vm1159, %v1071, %v1319
    %v1321 = vsel %vm1161, %v1078, %v1320
    %v1322 = vsel %vm1163, %v1085, %v1321
    %v1323 = vsel %vm1165, %v1092, %v1322
    %v1324 = vsel %vm1153, %v1106, %v1099
    %v1329 = vsel %vm1153, %v1001, %v994
    %v1330 = vsel %vm1155, %v1008, %v1329
    %v1331 = vsel %vm1157, %v1015, %v1330
    %v1332 = vsel %vm1159, %v1022, %v1331
    %v1333 = vsel %vm1161, %v1029, %v1332
    %v1334 = vsel %vm1163, %v1036, %v1333
    %v1335 = vsel %vm1165, %v1043, %v1334
    %v1336 = vsel %vm1153, %v1057, %v1050
    %v1337 = vsel %vm1155, %v1064, %v1336
    %v1338 = vsel %vm1157, %v1071, %v1337
    %v1339 = vsel %vm1159, %v1078, %v1338
    %v1340 = vsel %vm1161, %v1085, %v1339
    %v1341 = vsel %vm1163, %v1092, %v1340
    %v1342 = vsel %vm1165, %v1099, %v1341
    %v1343 = vsel %vm1153, %v1113, %v1106
    %1344 = vrot.lane.b32.xlu0 %v1335, 4
    %v1345 = vpop.permute.xlu0 %1344
    %1346 = vrot.lane.b32.xlu0 %v1342, 4
    %v1347 = vpop.permute.xlu0 %1346
    %1348 = vrot.lane.b32.xlu0 %v1343, 4
    %v1349 = vpop.permute.xlu0 %1348
    %v1354 = vsel %vm1153, %v1008, %v1001
    %v1355 = vsel %vm1155, %v1015, %v1354
    %v1356 = vsel %vm1157, %v1022, %v1355
    %v1357 = vsel %vm1159, %v1029, %v1356
    %v1358 = vsel %vm1161, %v1036, %v1357
    %v1359 = vsel %vm1163, %v1043, %v1358
    %v1360 = vsel %vm1165, %v1050, %v1359
    %v1361 = vsel %vm1153, %v1064, %v1057
    %v1362 = vsel %vm1155, %v1071, %v1361
    %v1363 = vsel %vm1157, %v1078, %v1362
    %v1364 = vsel %vm1159, %v1085, %v1363
    %v1365 = vsel %vm1161, %v1092, %v1364
    %v1366 = vsel %vm1163, %v1099, %v1365
    %v1367 = vsel %vm1165, %v1106, %v1366
    %v1368 = vsel %vm1153, %v1120, %v1113
    %1369 = vrot.lane.b32.xlu0 %v1360, 8
    %v1370 = vpop.permute.xlu0 %1369
    %1371 = vrot.lane.b32.xlu0 %v1367, 8
    %v1372 = vpop.permute.xlu0 %1371
    %1373 = vrot.lane.b32.xlu0 %v1368, 8
    %v1374 = vpop.permute.xlu0 %1373
    %v1379 = vsel %vm1153, %v1015, %v1008
    %v1380 = vsel %vm1155, %v1022, %v1379
    %v1381 = vsel %vm1157, %v1029, %v1380
    %v1382 = vsel %vm1159, %v1036, %v1381
    %v1383 = vsel %vm1161, %v1043, %v1382
    %v1384 = vsel %vm1163, %v1050, %v1383
    %v1385 = vsel %vm1165, %v1057, %v1384
    %v1386 = vsel %vm1153, %v1071, %v1064
    %v1387 = vsel %vm1155, %v1078, %v1386
    %v1388 = vsel %vm1157, %v1085, %v1387
    %v1389 = vsel %vm1159, %v1092, %v1388
    %v1390 = vsel %vm1161, %v1099, %v1389
    %v1391 = vsel %vm1163, %v1106, %v1390
    %v1392 = vsel %vm1165, %v1113, %v1391
    %v1393 = vsel %vm1153, %v1127, %v1120
    %1394 = vrot.lane.b32.xlu0 %v1385, 12
    %v1395 = vpop.permute.xlu0 %1394
    %1396 = vrot.lane.b32.xlu0 %v1392, 12
    %v1397 = vpop.permute.xlu0 %1396
    %1398 = vrot.lane.b32.xlu0 %v1393, 12
    %v1399 = vpop.permute.xlu0 %1398
    %v1404 = vsel %vm1153, %v1022, %v1015
    %v1405 = vsel %vm1155, %v1029, %v1404
    %v1406 = vsel %vm1157, %v1036, %v1405
    %v1407 = vsel %vm1159, %v1043, %v1406
    %v1408 = vsel %vm1161, %v1050, %v1407
    %v1409 = vsel %vm1163, %v1057, %v1408
    %v1410 = vsel %vm1165, %v1064, %v1409
    %v1411 = vsel %vm1153, %v1078, %v1071
    %v1412 = vsel %vm1155, %v1085, %v1411
    %v1413 = vsel %vm1157, %v1092, %v1412
    %v1414 = vsel %vm1159, %v1099, %v1413
    %v1415 = vsel %vm1161, %v1106, %v1414
    %v1416 = vsel %vm1163, %v1113, %v1415
    %v1417 = vsel %vm1165, %v1120, %v1416
    %v1418 = vsel %vm1153, %v1134, %v1127
    %1419 = vrot.lane.b32.xlu0 %v1410, 16
    %v1420 = vpop.permute.xlu0 %1419
    %1421 = vrot.lane.b32.xlu0 %v1417, 16
    %v1422 = vpop.permute.xlu0 %1421
    %1423 = vrot.lane.b32.xlu0 %v1418, 16
    %v1424 = vpop.permute.xlu0 %1423
    %v1428 = vsel %vm1278, %v1316, %v1345
    %v1429 = vsel %vm1278, %v1323, %v1347
    %v1430 = vsel %vm1278, %v1324, %v1349
    %v1431 = vsel %vm172, %v1428, %v1370
    %v1432 = vsel %vm172, %v1429, %v1372
    %v1433 = vsel %vm172, %v1430, %v1374
    %v1434 = vsel %vm1285, %v1431, %v1395
    %v1435 = vsel %vm1285, %v1432, %v1397
    %v1436 = vsel %vm1285, %v1433, %v1399
    %v1437 = vsel %vm179, %v1434, %v1420
    %v1438 = vsel %vm179, %v1435, %v1422
    %v1439 = vsel %vm179, %v1436, %v1424
    %vm1443 = vcmask 1041408
    %v1444 = vrot.slane %v1437, 6
    %v1445 = vrot.slane %v1438, 6
    %v1446 = vsel %vm1443, %v1444, %v1445
    %v1447 = vrot.slane %v1439, 6
    %v1448 = vsel %vm1443, %v1445, %v1447
    %v1450 = vsel %vm1443, %v1291, %v1444
    %v1451 = vlaneseq
    %v1452 = vshrl.u32 %v1451, 7
    %v1453 = vsub.s32 0, %v1452
    %v1454 = vrot.slane %v21, %v1453
    %vm1455 = vcmask 162816
    %v1457 = vsel %vm1455, %v1289, 0
    %v1460 = vsel %vm1455, %v1290, 0
    %v1463 = vsel %vm1455, %v1450, 0
    %v1465 = vsel %vm1455, %v1446, 0
    %v1467 = vsel %vm1455, %v1448, 0
    %v1470 = vsel %vm142, %v20, 0
    %1472 = vmatprep.subr.mxu0 0.0
    %1473 = vmatpush1.msra.mxu0 %v18
    %1474 = vmatprep.subr.mxu0 0.0
    %1475 = vmatpush1.msra.mxu0 %v19
    %1476 = vmatprep.subr.mxu0 0.0
    %1477 = vmatpush1.msra.mxu0 %v1470
    %1478 = vmatprep.subr.mxu0 0.0
    %1479 = vmatpush1.msra.mxu0 0.0
    %1480 = vmatprep.subr.mxu0 0.0
    %1481 = vmatpush1.msra.mxu0 0.0
    %1482 = vmatprep.subr.mxu0 0.0
    %1483 = vmatpush1.msra.mxu0 0.0
    %1484 = vmatprep.subr.mxu0 0.0
    %1485 = vmatpush1.msra.mxu0 0.0
    %1486 = vmatprep.subr.mxu0 0.0
    %1487 = vmatpush1.msra.mxu0 0.0
    %1488 = vmatprep.subr.mxu0 0.0
    %1489 = vmatpush1.msra.mxu0 0.0
    %1490 = vmatprep.subr.mxu0 0.0
    %1491 = vmatpush1.msra.mxu0 0.0
    %1492 = vmatprep.subr.mxu0 0.0
    %1493 = vmatpush1.msra.mxu0 0.0
    %1494 = vmatprep.subr.mxu0 0.0
    %1495 = vmatpush1.msra.mxu0 0.0
    %1496 = vmatprep.subr.mxu0 0.0
    %1497 = vmatpush1.msra.mxu0 0.0
    %1498 = vmatprep.subr.mxu0 0.0
    %1499 = vmatpush1.msra.mxu0 0.0
    %1500 = vmatprep.subr.mxu0 0.0
    %1501 = vmatpush1.msra.mxu0 0.0
    %1502 = vmatprep.subr.mxu0 0.0
    %1503 = vmatpush1.msra.mxu0 0.0
    %1504 = vmatprep.subr.mxu0 0.0
    %1505 = vmatpush1.msra.mxu0 0.0
    %1506 = vmatprep.subr.mxu0 0.0
    %1507 = vmatpush1.msra.mxu0 0.0
    %1508 = vmatprep.subr.mxu0 0.0
    %1509 = vmatpush1.msra.mxu0 0.0
    %1510 = vmatprep.subr.mxu0 0.0
    %1511 = vmatpush1.msra.mxu0 0.0
    %1512 = vmatprep.subr.mxu0 0.0
    %1513 = vmatpush1.msra.mxu0 0.0
    %1514 = vmatprep.subr.mxu0 0.0
    %1515 = vmatpush1.msra.mxu0 0.0
    %1516 = vmatprep.subr.mxu0 0.0
    %1517 = vmatpush1.msra.mxu0 0.0
    %1518 = vmatprep.subr.mxu0 0.0
    %1519 = vmatpush1.msra.mxu0 0.0
    %1520 = vmatprep.subr.mxu0 0.0
    %1521 = vmatpush1.msra.mxu0 0.0
    %1522 = vmatprep.subr.mxu0 0.0
    %1523 = vmatpush1.msra.mxu0 0.0
    %1524 = vmatprep.subr.mxu0 0.0
    %1525 = vmatpush1.msra.mxu0 0.0
    %1526 = vmatprep.subr.mxu0 0.0
    %1527 = vmatpush1.msra.mxu0 0.0
    %1528 = vmatprep.subr.mxu0 0.0
    %1529 = vmatpush1.msra.mxu0 0.0
    %1530 = vmatprep.subr.mxu0 0.0
    %1531 = vmatpush1.msra.mxu0 0.0
    %1532 = vmatprep.subr.mxu0 0.0
    %1533 = vmatpush1.msra.mxu0 0.0
    %1534 = vmatprep.subr.mxu0 0.0
    %1535 = vmatpush1.msra.mxu0 0.0
    %1536 = vmatprep.mubr.f32.mxu0 0.0
    %1537 = vmatmul.mubr.f32.gmra.mrb[0].mxu0 %v1457
    %v1538 = vpop.f32.mrb[0].mxu0
    %v1539 = vadd.f32 %v1454, %v1538
    %v1540 = vpop.f32.mrb[0].mxu0
    %1541 = vmatprep.mubr.f32.mxu0 0.0
    %1542 = vmatmul.mubr.f32.gmra.mrb[0].mxu0 %v1460
    %v1543 = vpop.f32.mrb[0].mxu0
    %v1544 = vadd.f32 %v1454, %v1543
    %v1545 = vpop.f32.mrb[0].mxu0
    %1546 = vmatprep.mubr.f32.mxu0 0.0
    %1547 = vmatmul.mubr.f32.gmra.mrb[0].mxu0 %v1463
    %v1548 = vpop.f32.mrb[0].mxu0
    %v1549 = vadd.f32 %v1454, %v1548
    %v1550 = vpop.f32.mrb[0].mxu0
    %1551 = vmatprep.mubr.f32.mxu0 0.0
    %1552 = vmatmul.mubr.f32.gmra.mrb[0].mxu0 %v1465
    %v1553 = vpop.f32.mrb[0].mxu0
    %v1554 = vadd.f32 %v1454, %v1553
    %v1555 = vpop.f32.mrb[0].mxu0
    %1556 = vmatprep.mubr.f32.mxu0 0.0
    %1557 = vmatmul.mubr.f32.gmra.mrb[0].mxu0 %v1467
    %v1558 = vpop.f32.mrb[0].mxu0
    %v1559 = vadd.f32 %v1454, %v1558
    %v1560 = vpop.f32.mrb[0].mxu0
    %1561 = vdwg.mxu0
    %vm1562 = vcmp.gt.f32.partialorder %v1539, 0.0
    %vm1563 = vcmp.gt.f32.partialorder %v1544, 0.0
    %vm1564 = vcmp.gt.f32.partialorder %v1549, 0.0
    %vm1565 = vcmp.gt.f32.partialorder %v1554, 0.0
    %vm1566 = vcmp.gt.f32.partialorder %v1559, 0.0
    %v1567 = vmin.f32 %v1539, 0.0
    %v1568 = vmin.f32 %v1544, 0.0
    %v1569 = vmin.f32 %v1549, 0.0
    %v1570 = vmin.f32 %v1554, 0.0
    %v1571 = vmin.f32 %v1559, 0.0
    %v1572 = vmul.f32 %v1567, 1.442695
    %v1573 = vpow.pop %v1572
    %v1574 = vmul.f32 %v1568, 1.442695
    %v1575 = vpow.pop %v1574
    %v1576 = vmul.f32 %v1569, 1.442695
    %v1577 = vpow.pop %v1576
    %v1578 = vmul.f32 %v1570, 1.442695
    %v1579 = vpow.pop %v1578
    %v1580 = vmul.f32 %v1571, 1.442695
    %v1581 = vpow.pop %v1580
    %v1582 = vsub.f32 %v1573, 1.0
    %v1583 = vsub.f32 %v1575, 1.0
    %v1584 = vsub.f32 %v1577, 1.0
    %v1585 = vsub.f32 %v1579, 1.0
    %v1586 = vsub.f32 %v1581, 1.0
    %v1587 = vsel %vm1562, %v1539, %v1582
    %v1588 = vsel %vm1563, %v1544, %v1583
    %v1589 = vsel %vm1564, %v1549, %v1584
    %v1590 = vsel %vm1565, %v1554, %v1585
    %v1591 = vsel %vm1566, %v1559, %v1586
    %v1595 = vcombine.high %v1587, %v1587
    %v1597 = vunpack.c.l.s4 1983009808
    %v1598 = vunpack.c.0.s8 %v1597
    %v1599 = vlaneseq
    %v1600 = vshrl.u32 %v1599, 7
    %v1601 = vsub.s32 %v1598, %v1600
    %v1602 = vrot.slane %v1587, %v1601
    %v1604 = vunpack.c.l.s4 1983009808
    %v1605 = vunpack.c.0.s8 %v1604
    %v1606 = vlaneseq
    %v1607 = vshrl.u32 %v1606, 7
    %v1608 = vsub.s32 %v1605, %v1607
    %v1609 = vrot.slane %v1595, %v1608
    %v1610 = vcombine.high %v1602, %v1602
    %v1611 = vcombine.high %v1609, %v1609
    %v1612 = vcombine.high %v1588, %v1588
    %v1614 = vunpack.c.l.s4 1983009808
    %v1615 = vunpack.c.0.s8 %v1614
    %v1616 = vlaneseq
    %v1617 = vshrl.u32 %v1616, 7
    %v1618 = vsub.s32 %v1615, %v1617
    %v1619 = vrot.slane %v1588, %v1618
    %v1621 = vunpack.c.l.s4 1983009808
    %v1622 = vunpack.c.0.s8 %v1621
    %v1623 = vlaneseq
    %v1624 = vshrl.u32 %v1623, 7
    %v1625 = vsub.s32 %v1622, %v1624
    %v1626 = vrot.slane %v1612, %v1625
    %v1627 = vcombine.high %v1619, %v1619
    %v1628 = vcombine.high %v1626, %v1626
    %v1630 = vunpack.c.l.s4 1983009808
    %v1631 = vunpack.c.0.s8 %v1630
    %v1632 = vlaneseq
    %v1633 = vshrl.u32 %v1632, 7
    %v1634 = vsub.s32 %v1631, %v1633
    %v1635 = vrot.slane %v1589, %v1634
    %vm1645 = vcmask 58368
    %v1646 = vsel %vm1645, %v1602, -inf
    %v1647 = vrot.slane %v1646, 4
    %v1648 = vmax.f32 %v1646, %v1647
    %v1649 = vrot.slane %v1648, 2
    %v1650 = vmax.f32 %v1648, %v1649
    %v1651 = vrot.slane %v1650, 1
    %v1652 = vmax.f32 %v1650, %v1651
    %v1653 = vsel %vm1645, %v1610, -inf
    %v1654 = vrot.slane %v1653, 4
    %v1655 = vmax.f32 %v1653, %v1654
    %v1656 = vrot.slane %v1655, 2
    %v1657 = vmax.f32 %v1655, %v1656
    %v1658 = vrot.slane %v1657, 1
    %v1659 = vmax.f32 %v1657, %v1658
    %v1660 = vsel %vm1645, %v1609, -inf
    %v1661 = vrot.slane %v1660, 4
    %v1662 = vmax.f32 %v1660, %v1661
    %v1663 = vrot.slane %v1662, 2
    %v1664 = vmax.f32 %v1662, %v1663
    %v1665 = vrot.slane %v1664, 1
    %v1666 = vmax.f32 %v1664, %v1665
    %v1667 = vsel %vm1645, %v1611, -inf
    %v1668 = vrot.slane %v1667, 4
    %v1669 = vmax.f32 %v1667, %v1668
    %v1670 = vrot.slane %v1669, 2
    %v1671 = vmax.f32 %v1669, %v1670
    %v1672 = vrot.slane %v1671, 1
    %v1673 = vmax.f32 %v1671, %v1672
    %v1674 = vsel %vm1645, %v1619, -inf
    %v1675 = vrot.slane %v1674, 4
    %v1676 = vmax.f32 %v1674, %v1675
    %v1677 = vrot.slane %v1676, 2
    %v1678 = vmax.f32 %v1676, %v1677
    %v1679 = vrot.slane %v1678, 1
    %v1680 = vmax.f32 %v1678, %v1679
    %v1681 = vsel %vm1645, %v1627, -inf
    %v1682 = vrot.slane %v1681, 4
    %v1683 = vmax.f32 %v1681, %v1682
    %v1684 = vrot.slane %v1683, 2
    %v1685 = vmax.f32 %v1683, %v1684
    %v1686 = vrot.slane %v1685, 1
    %v1687 = vmax.f32 %v1685, %v1686
    %v1688 = vsel %vm1645, %v1626, -inf
    %v1689 = vrot.slane %v1688, 4
    %v1690 = vmax.f32 %v1688, %v1689
    %v1691 = vrot.slane %v1690, 2
    %v1692 = vmax.f32 %v1690, %v1691
    %v1693 = vrot.slane %v1692, 1
    %v1694 = vmax.f32 %v1692, %v1693
    %v1695 = vsel %vm1645, %v1628, -inf
    %v1696 = vrot.slane %v1695, 4
    %v1697 = vmax.f32 %v1695, %v1696
    %v1698 = vrot.slane %v1697, 2
    %v1699 = vmax.f32 %v1697, %v1698
    %v1700 = vrot.slane %v1699, 1
    %v1701 = vmax.f32 %v1699, %v1700
    %v1702 = vsel %vm1645, %v1635, -inf
    %v1703 = vrot.slane %v1702, 4
    %v1704 = vmax.f32 %v1702, %v1703
    %v1705 = vrot.slane %v1704, 2
    %v1706 = vmax.f32 %v1704, %v1705
    %v1707 = vrot.slane %v1706, 1
    %v1708 = vmax.f32 %v1706, %v1707
    %v1711 = vcombine.high %v1589, %v1589
    %v1713 = vunpack.c.l.s4 1983009808
    %v1714 = vunpack.c.0.s8 %v1713
    %v1715 = vlaneseq
    %v1716 = vshrl.u32 %v1715, 7
    %v1717 = vsub.s32 %v1714, %v1716
    %v1718 = vrot.slane %v1711, %v1717
    %v1719 = vcombine.high %v1635, %v1635
    %v1720 = vcombine.high %v1718, %v1718
    %v1721 = vcombine.high %v1590, %v1590
    %v1723 = vunpack.c.l.s4 1983009808
    %v1724 = vunpack.c.0.s8 %v1723
    %v1725 = vlaneseq
    %v1726 = vshrl.u32 %v1725, 7
    %v1727 = vsub.s32 %v1724, %v1726
    %v1728 = vrot.slane %v1590, %v1727
    %v1730 = vunpack.c.l.s4 1983009808
    %v1731 = vunpack.c.0.s8 %v1730
    %v1732 = vlaneseq
    %v1733 = vshrl.u32 %v1732, 7
    %v1734 = vsub.s32 %v1731, %v1733
    %v1735 = vrot.slane %v1721, %v1734
    %v1736 = vcombine.high %v1728, %v1728
    %v1737 = vcombine.high %v1735, %v1735
    %v1739 = vunpack.c.l.s4 1983009808
    %v1740 = vunpack.c.0.s8 %v1739
    %v1741 = vlaneseq
    %v1742 = vshrl.u32 %v1741, 7
    %v1743 = vsub.s32 %v1740, %v1742
    %v1744 = vrot.slane %v1591, %v1743
    %v1745 = vcombine.high %v1744, %v1744
    %v1755 = vsel %vm1645, %v1719, -inf
    %v1756 = vrot.slane %v1755, 4
    %v1757 = vmax.f32 %v1755, %v1756
    %v1758 = vrot.slane %v1757, 2
    %v1759 = vmax.f32 %v1757, %v1758
    %v1760 = vrot.slane %v1759, 1
    %v1761 = vmax.f32 %v1759, %v1760
    %v1762 = vsel %vm1645, %v1718, -inf
    %v1763 = vrot.slane %v1762, 4
    %v1764 = vmax.f32 %v1762, %v1763
    %v1765 = vrot.slane %v1764, 2
    %v1766 = vmax.f32 %v1764, %v1765
    %v1767 = vrot.slane %v1766, 1
    %v1768 = vmax.f32 %v1766, %v1767
    %v1769 = vsel %vm1645, %v1720, -inf
    %v1770 = vrot.slane %v1769, 4
    %v1771 = vmax.f32 %v1769, %v1770
    %v1772 = vrot.slane %v1771, 2
    %v1773 = vmax.f32 %v1771, %v1772
    %v1774 = vrot.slane %v1773, 1
    %v1775 = vmax.f32 %v1773, %v1774
    %v1776 = vsel %vm1645, %v1728, -inf
    %v1777 = vrot.slane %v1776, 4
    %v1778 = vmax.f32 %v1776, %v1777
    %v1779 = vrot.slane %v1778, 2
    %v1780 = vmax.f32 %v1778, %v1779
    %v1781 = vrot.slane %v1780, 1
    %v1782 = vmax.f32 %v1780, %v1781
    %v1783 = vsel %vm1645, %v1736, -inf
    %v1784 = vrot.slane %v1783, 4
    %v1785 = vmax.f32 %v1783, %v1784
    %v1786 = vrot.slane %v1785, 2
    %v1787 = vmax.f32 %v1785, %v1786
    %v1788 = vrot.slane %v1787, 1
    %v1789 = vmax.f32 %v1787, %v1788
    %v1790 = vsel %vm1645, %v1735, -inf
    %v1791 = vrot.slane %v1790, 4
    %v1792 = vmax.f32 %v1790, %v1791
    %v1793 = vrot.slane %v1792, 2
    %v1794 = vmax.f32 %v1792, %v1793
    %v1795 = vrot.slane %v1794, 1
    %v1796 = vmax.f32 %v1794, %v1795
    %v1797 = vsel %vm1645, %v1737, -inf
    %v1798 = vrot.slane %v1797, 4
    %v1799 = vmax.f32 %v1797, %v1798
    %v1800 = vrot.slane %v1799, 2
    %v1801 = vmax.f32 %v1799, %v1800
    %v1802 = vrot.slane %v1801, 1
    %v1803 = vmax.f32 %v1801, %v1802
    %v1804 = vsel %vm1645, %v1744, -inf
    %v1805 = vrot.slane %v1804, 4
    %v1806 = vmax.f32 %v1804, %v1805
    %v1807 = vrot.slane %v1806, 2
    %v1808 = vmax.f32 %v1806, %v1807
    %v1809 = vrot.slane %v1808, 1
    %v1810 = vmax.f32 %v1808, %v1809
    %v1811 = vsel %vm1645, %v1745, -inf
    %v1812 = vrot.slane %v1811, 4
    %v1813 = vmax.f32 %v1811, %v1812
    %v1814 = vrot.slane %v1813, 2
    %v1815 = vmax.f32 %v1813, %v1814
    %v1816 = vrot.slane %v1815, 1
    %v1817 = vmax.f32 %v1815, %v1816
    %v1823 = vsel %vm1153, %v1659, %v1652
    %v1824 = vsel %vm1155, %v1666, %v1823
    %v1825 = vsel %vm1157, %v1673, %v1824
    %v1826 = vsel %vm1159, %v1680, %v1825
    %v1829 = vsel %vm1153, %v1666, %v1659
    %v1830 = vsel %vm1155, %v1673, %v1829
    %v1831 = vsel %vm1157, %v1680, %v1830
    %v1832 = vsel %vm1159, %v1687, %v1831
    %1833 = vrot.lane.b32.xlu0 %v1832, 8
    %v1834 = vpop.permute.xlu0 %1833
    %v1837 = vsel %vm1153, %v1673, %v1666
    %v1838 = vsel %vm1155, %v1680, %v1837
    %v1839 = vsel %vm1157, %v1687, %v1838
    %v1840 = vsel %vm1159, %v1694, %v1839
    %1841 = vrot.lane.b32.xlu0 %v1840, 16
    %v1842 = vpop.permute.xlu0 %1841
    %v1845 = vsel %vm1153, %v1680, %v1673
    %v1846 = vsel %vm1155, %v1687, %v1845
    %v1847 = vsel %vm1157, %v1694, %v1846
    %v1848 = vsel %vm1159, %v1701, %v1847
    %1849 = vrot.lane.b32.xlu0 %v1848, 24
    %v1850 = vpop.permute.xlu0 %1849
    %v1853 = vsel %vm1153, %v1687, %v1680
    %v1854 = vsel %vm1155, %v1694, %v1853
    %v1855 = vsel %vm1157, %v1701, %v1854
    %v1856 = vsel %vm1159, %v1708, %v1855
    %1857 = vrot.lane.b32.xlu0 %v1856, 32
    %v1858 = vpop.permute.xlu0 %1857
    %v1860 = vsel %vm172, %v1826, %v1834
    %v1861 = vsel %vm179, %v1860, %v1842
    %v1862 = vsel %vm186, %v1861, %v1850
    %v1863 = vsel %vm193, %v1862, %v1858
    %v1869 = vsel %vm1153, %v1768, %v1761
    %v1870 = vsel %vm1155, %v1775, %v1869
    %v1871 = vsel %vm1157, %v1782, %v1870
    %v1872 = vsel %vm1159, %v1789, %v1871
    %v1875 = vsel %vm1153, %v1775, %v1768
    %v1876 = vsel %vm1155, %v1782, %v1875
    %v1877 = vsel %vm1157, %v1789, %v1876
    %v1878 = vsel %vm1159, %v1796, %v1877
    %1879 = vrot.lane.b32.xlu0 %v1878, 8
    %v1880 = vpop.permute.xlu0 %1879
    %v1883 = vsel %vm1153, %v1782, %v1775
    %v1884 = vsel %vm1155, %v1789, %v1883
    %v1885 = vsel %vm1157, %v1796, %v1884
    %v1886 = vsel %vm1159, %v1803, %v1885
    %1887 = vrot.lane.b32.xlu0 %v1886, 16
    %v1888 = vpop.permute.xlu0 %1887
    %v1891 = vsel %vm1153, %v1789, %v1782
    %v1892 = vsel %vm1155, %v1796, %v1891
    %v1893 = vsel %vm1157, %v1803, %v1892
    %v1894 = vsel %vm1159, %v1810, %v1893
    %1895 = vrot.lane.b32.xlu0 %v1894, 24
    %v1896 = vpop.permute.xlu0 %1895
    %v1899 = vsel %vm1153, %v1796, %v1789
    %v1900 = vsel %vm1155, %v1803, %v1899
    %v1901 = vsel %vm1157, %v1810, %v1900
    %v1902 = vsel %vm1159, %v1817, %v1901
    %1903 = vrot.lane.b32.xlu0 %v1902, 32
    %v1904 = vpop.permute.xlu0 %1903
    %v1906 = vsel %vm172, %v1872, %v1880
    %v1907 = vsel %vm179, %v1906, %v1888
    %v1908 = vsel %vm186, %v1907, %v1896
    %v1909 = vsel %vm193, %v1908, %v1904
    %v1911 = vrot.slane %v1909, 3
    %v1913 = vsel %vm112, %v1863, %v1911
    %v1914 = vlaneseq
    %v1915 = vshrl.u32 %v1914, 7
    %v1916 = vsub.s32 0, %v1915
    %v1917 = vrot.slane %v27, %v1916
    %v1919 = vsel %vm369, %v1913, 0
    %v1921 = vsel %vm369, %v1911, 0
    %1923 = vmatprep.subr.mxu0 0.0
    %1924 = vmatpush1.msra.mxu0 %v22
    %1925 = vmatprep.subr.mxu0 0.0
    %1926 = vmatpush1.msra.mxu0 %v23
    %1927 = vmatprep.subr.mxu0 0.0
    %1928 = vmatpush1.msra.mxu0 %v24
    %1929 = vmatprep.subr.mxu0 0.0
    %1930 = vmatpush1.msra.mxu0 %v25
    %1931 = vmatprep.subr.mxu0 0.0
    %1932 = vmatpush1.msra.mxu0 %v26
    %1933 = vmatprep.subr.mxu0 0.0
    %1934 = vmatpush1.msra.mxu0 0.0
    %1935 = vmatprep.subr.mxu0 0.0
    %1936 = vmatpush1.msra.mxu0 0.0
    %1937 = vmatprep.subr.mxu0 0.0
    %1938 = vmatpush1.msra.mxu0 0.0
    %1939 = vmatprep.subr.mxu0 0.0
    %1940 = vmatpush1.msra.mxu0 0.0
    %1941 = vmatprep.subr.mxu0 0.0
    %1942 = vmatpush1.msra.mxu0 0.0
    %1943 = vmatprep.subr.mxu0 0.0
    %1944 = vmatpush1.msra.mxu0 0.0
    %1945 = vmatprep.subr.mxu0 0.0
    %1946 = vmatpush1.msra.mxu0 0.0
    %1947 = vmatprep.subr.mxu0 0.0
    %1948 = vmatpush1.msra.mxu0 0.0
    %1949 = vmatprep.subr.mxu0 0.0
    %1950 = vmatpush1.msra.mxu0 0.0
    %1951 = vmatprep.subr.mxu0 0.0
    %1952 = vmatpush1.msra.mxu0 0.0
    %1953 = vmatprep.subr.mxu0 0.0
    %1954 = vmatpush1.msra.mxu0 0.0
    %1955 = vmatprep.subr.mxu0 0.0
    %1956 = vmatpush1.msra.mxu0 0.0
    %1957 = vmatprep.subr.mxu0 0.0
    %1958 = vmatpush1.msra.mxu0 0.0
    %1959 = vmatprep.subr.mxu0 0.0
    %1960 = vmatpush1.msra.mxu0 0.0
    %1961 = vmatprep.subr.mxu0 0.0
    %1962 = vmatpush1.msra.mxu0 0.0
    %1963 = vmatprep.subr.mxu0 0.0
    %1964 = vmatpush1.msra.mxu0 0.0
    %1965 = vmatprep.subr.mxu0 0.0
    %1966 = vmatpush1.msra.mxu0 0.0
    %1967 = vmatprep.subr.mxu0 0.0
    %1968 = vmatpush1.msra.mxu0 0.0
    %1969 = vmatprep.subr.mxu0 0.0
    %1970 = vmatpush1.msra.mxu0 0.0
    %1971 = vmatprep.subr.mxu0 0.0
    %1972 = vmatpush1.msra.mxu0 0.0
    %1973 = vmatprep.subr.mxu0 0.0
    %1974 = vmatpush1.msra.mxu0 0.0
    %1975 = vmatprep.subr.mxu0 0.0
    %1976 = vmatpush1.msra.mxu0 0.0
    %1977 = vmatprep.subr.mxu0 0.0
    %1978 = vmatpush1.msra.mxu0 0.0
    %1979 = vmatprep.subr.mxu0 0.0
    %1980 = vmatpush1.msra.mxu0 0.0
    %1981 = vmatprep.subr.mxu0 0.0
    %1982 = vmatpush1.msra.mxu0 0.0
    %1983 = vmatprep.subr.mxu0 0.0
    %1984 = vmatpush1.msra.mxu0 0.0
    %1985 = vmatprep.subr.mxu0 0.0
    %1986 = vmatpush1.msra.mxu0 0.0
    %1987 = vmatprep.mubr.f32.mxu0 0.0
    %1988 = vmatmul.mubr.f32.gmra.mrb[0].mxu0 %v1919
    %v1989 = vpop.f32.mrb[0].mxu0
    %v1990 = vadd.f32 %v1917, %v1989
    %v1991 = vpop.f32.mrb[0].mxu0
    %1992 = vmatprep.mubr.f32.mxu0 0.0
    %1993 = vmatmul.mubr.f32.gmra.mrb[0].mxu0 %v1921
    %v1994 = vpop.f32.mrb[0].mxu0
    %v1995 = vadd.f32 %v1917, %v1994
    %v1996 = vpop.f32.mrb[0].mxu0
    %1997 = vdwg.mxu0
    %vm1998 = vcmp.gt.f32.partialorder %v1990, 0.0
    %vm1999 = vcmp.gt.f32.partialorder %v1995, 0.0
    %v2000 = vmin.f32 %v1990, 0.0
    %v2001 = vmin.f32 %v1995, 0.0
    %v2002 = vmul.f32 %v2000, 1.442695
    %v2003 = vpow.pop %v2002
    %v2004 = vmul.f32 %v2001, 1.442695
    %v2005 = vpow.pop %v2004
    %v2006 = vsub.f32 %v2003, 1.0
    %v2007 = vsub.f32 %v2005, 1.0
    %v2008 = vsel %vm1998, %v1990, %v2006
    %v2009 = vsel %vm1999, %v1995, %v2007
    %v2012 = vunpack.c.l.s4 1983009808
    %v2013 = vunpack.c.0.s8 %v2012
    %v2014 = vlaneseq
    %v2015 = vshrl.u32 %v2014, 7
    %v2016 = vsub.s32 %v2013, %v2015
    %v2017 = vrot.slane %v2008, %v2016
    %v2018 = vcombine.high %v2017, %v2017
    %vm2021 = vcmask 123904
    %v2022 = vsel %vm2021, %v2017, -inf
    %v2023 = vrot.slane %v2022, 4
    %v2024 = vmax.f32 %v2022, %v2023
    %v2025 = vrot.slane %v2024, 2
    %v2026 = vmax.f32 %v2024, %v2025
    %v2027 = vrot.slane %v2026, 1
    %v2028 = vmax.f32 %v2026, %v2027
    %v2029 = vsel %vm2021, %v2018, -inf
    %v2030 = vrot.slane %v2029, 4
    %v2031 = vmax.f32 %v2029, %v2030
    %v2032 = vrot.slane %v2031, 2
    %v2033 = vmax.f32 %v2031, %v2032
    %v2034 = vrot.slane %v2033, 1
    %v2035 = vmax.f32 %v2033, %v2034
    %v2037 = vcombine.high %v2008, %v2008
    %v2039 = vunpack.c.l.s4 1983009808
    %v2040 = vunpack.c.0.s8 %v2039
    %v2041 = vlaneseq
    %v2042 = vshrl.u32 %v2041, 7
    %v2043 = vsub.s32 %v2040, %v2042
    %v2044 = vrot.slane %v2037, %v2043
    %v2045 = vcombine.high %v2044, %v2044
    %v2047 = vunpack.c.l.s4 1983009808
    %v2048 = vunpack.c.0.s8 %v2047
    %v2049 = vlaneseq
    %v2050 = vshrl.u32 %v2049, 7
    %v2051 = vsub.s32 %v2048, %v2050
    %v2052 = vrot.slane %v2009, %v2051
    %vm2053 = vcmask 1040384
    %vm2054 = vmor %vm2053, %vm1155
    %vm2055 = vmor %vm2054, %vm1159
    %vm2056 = vmor %vm2055, %vm1163
    %v2057 = vrot.slane %v2044, 7
    %v2058 = vrot.slane %v2057, 2
    %v2059 = vrot.slane %v2045, 7
    %v2060 = vsel %vm2056, %v2058, %v2059
    %v2061 = vrot.slane %v2059, 2
    %v2062 = vrot.slane %v2052, 7
    %v2063 = vsel %vm2056, %v2061, %v2062
    %v2066 = vsel %vm2021, %v2060, -inf
    %v2067 = vrot.slane %v2066, 4
    %v2068 = vmax.f32 %v2066, %v2067
    %v2069 = vrot.slane %v2068, 2
    %v2070 = vmax.f32 %v2068, %v2069
    %v2071 = vrot.slane %v2070, 1
    %v2072 = vmax.f32 %v2070, %v2071
    %v2073 = vsel %vm2021, %v2063, -inf
    %v2074 = vrot.slane %v2073, 4
    %v2075 = vmax.f32 %v2073, %v2074
    %v2076 = vrot.slane %v2075, 2
    %v2077 = vmax.f32 %v2075, %v2076
    %v2078 = vrot.slane %v2077, 1
    %v2079 = vmax.f32 %v2077, %v2078
    %v2080 = vsel %vm2053, %v2028, %v2072
    %v2082 = vsel %vm179, %v2080, 0
    %2084 = vmatprep.subr.mxu0 0.0
    %2085 = vmatpush1.msra.mxu0 %v28
    %2086 = vmatprep.subr.mxu0 0.0
    %2087 = vmatpush1.msra.mxu0 %v29
    %2088 = vmatprep.subr.mxu0 0.0
    %2089 = vmatpush1.msra.mxu0 0.0
    %2090 = vmatprep.subr.mxu0 0.0
    %2091 = vmatpush1.msra.mxu0 0.0
    %2092 = vmatprep.subr.mxu0 0.0
    %2093 = vmatpush1.msra.mxu0 0.0
    %2094 = vmatprep.subr.mxu0 0.0
    %2095 = vmatpush1.msra.mxu0 0.0
    %2096 = vmatprep.subr.mxu0 0.0
    %2097 = vmatpush1.msra.mxu0 0.0
    %2098 = vmatprep.subr.mxu0 0.0
    %2099 = vmatpush1.msra.mxu0 0.0
    %2100 = vmatprep.subr.mxu0 0.0
    %2101 = vmatpush1.msra.mxu0 0.0
    %2102 = vmatprep.subr.mxu0 0.0
    %2103 = vmatpush1.msra.mxu0 0.0
    %2104 = vmatprep.subr.mxu0 0.0
    %2105 = vmatpush1.msra.mxu0 0.0
    %2106 = vmatprep.subr.mxu0 0.0
    %2107 = vmatpush1.msra.mxu0 0.0
    %2108 = vmatprep.subr.mxu0 0.0
    %2109 = vmatpush1.msra.mxu0 0.0
    %2110 = vmatprep.subr.mxu0 0.0
    %2111 = vmatpush1.msra.mxu0 0.0
    %2112 = vmatprep.subr.mxu0 0.0
    %2113 = vmatpush1.msra.mxu0 0.0
    %2114 = vmatprep.subr.mxu0 0.0
    %2115 = vmatpush1.msra.mxu0 0.0
    %2116 = vmatprep.subr.mxu0 0.0
    %2117 = vmatpush1.msra.mxu0 0.0
    %2118 = vmatprep.subr.mxu0 0.0
    %2119 = vmatpush1.msra.mxu0 0.0
    %2120 = vmatprep.subr.mxu0 0.0
    %2121 = vmatpush1.msra.mxu0 0.0
    %2122 = vmatprep.subr.mxu0 0.0
    %2123 = vmatpush1.msra.mxu0 0.0
    %2124 = vmatprep.subr.mxu0 0.0
    %2125 = vmatpush1.msra.mxu0 0.0
    %2126 = vmatprep.subr.mxu0 0.0
    %2127 = vmatpush1.msra.mxu0 0.0
    %2128 = vmatprep.subr.mxu0 0.0
    %2129 = vmatpush1.msra.mxu0 0.0
    %2130 = vmatprep.subr.mxu0 0.0
    %2131 = vmatpush1.msra.mxu0 0.0
    %2132 = vmatprep.subr.mxu0 0.0
    %2133 = vmatpush1.msra.mxu0 0.0
    %2134 = vmatprep.subr.mxu0 0.0
    %2135 = vmatpush1.msra.mxu0 0.0
    %2136 = vmatprep.subr.mxu0 0.0
    %2137 = vmatpush1.msra.mxu0 0.0
    %2138 = vmatprep.subr.mxu0 0.0
    %2139 = vmatpush1.msra.mxu0 0.0
    %2140 = vmatprep.subr.mxu0 0.0
    %2141 = vmatpush1.msra.mxu0 0.0
    %2142 = vmatprep.subr.mxu0 0.0
    %2143 = vmatpush1.msra.mxu0 0.0
    %2144 = vmatprep.subr.mxu0 0.0
    %2145 = vmatpush1.msra.mxu0 0.0
    %2146 = vmatprep.subr.mxu0 0.0
    %2147 = vmatpush1.msra.mxu0 0.0
    %2148 = vmatprep.mubr.f32.mxu0 0.0
    %2149 = vmatmul.mubr.f32.gmra.mrb[0].mxu0 %v2082
    %v2150 = vpop.f32.mrb[0].mxu0
    %v2151 = vadd.f32 0.0, %v2150
    %v2152 = vpop.f32.mrb[0].mxu0
    %2153 = vdwg.mxu0
    %v2154 = vlaneseq
    %v2155 = vshrl.u32 %v2154, 7
    %v2156 = vsub.s32 0, %v2155
    %v2157 = vrot.slane %v32, %v2156
    %v2158 = vadd.f32 %v2157, %v2151
    %v2159 = vsel %vm2053, %v2035, %v2079
    %v2161 = vsel %vm179, %v2159, 0
    %2163 = vmatprep.subr.mxu0 0.0
    %2164 = vmatpush1.msra.mxu0 %v30
    %2165 = vmatprep.subr.mxu0 0.0
    %2166 = vmatpush1.msra.mxu0 %v31
    %2167 = vmatprep.subr.mxu0 0.0
    %2168 = vmatpush1.msra.mxu0 0.0
    %2169 = vmatprep.subr.mxu0 0.0
    %2170 = vmatpush1.msra.mxu0 0.0
    %2171 = vmatprep.subr.mxu0 0.0
    %2172 = vmatpush1.msra.mxu0 0.0
    %2173 = vmatprep.subr.mxu0 0.0
    %2174 = vmatpush1.msra.mxu0 0.0
    %2175 = vmatprep.subr.mxu0 0.0
    %2176 = vmatpush1.msra.mxu0 0.0
    %2177 = vmatprep.subr.mxu0 0.0
    %2178 = vmatpush1.msra.mxu0 0.0
    %2179 = vmatprep.subr.mxu0 0.0
    %2180 = vmatpush1.msra.mxu0 0.0
    %2181 = vmatprep.subr.mxu0 0.0
    %2182 = vmatpush1.msra.mxu0 0.0
    %2183 = vmatprep.subr.mxu0 0.0
    %2184 = vmatpush1.msra.mxu0 0.0
    %2185 = vmatprep.subr.mxu0 0.0
    %2186 = vmatpush1.msra.mxu0 0.0
    %2187 = vmatprep.subr.mxu0 0.0
    %2188 = vmatpush1.msra.mxu0 0.0
    %2189 = vmatprep.subr.mxu0 0.0
    %2190 = vmatpush1.msra.mxu0 0.0
    %2191 = vmatprep.subr.mxu0 0.0
    %2192 = vmatpush1.msra.mxu0 0.0
    %2193 = vmatprep.subr.mxu0 0.0
    %2194 = vmatpush1.msra.mxu0 0.0
    %2195 = vmatprep.subr.mxu0 0.0
    %2196 = vmatpush1.msra.mxu0 0.0
    %2197 = vmatprep.subr.mxu0 0.0
    %2198 = vmatpush1.msra.mxu0 0.0
    %2199 = vmatprep.subr.mxu0 0.0
    %2200 = vmatpush1.msra.mxu0 0.0
    %2201 = vmatprep.subr.mxu0 0.0
    %2202 = vmatpush1.msra.mxu0 0.0
    %2203 = vmatprep.subr.mxu0 0.0
    %2204 = vmatpush1.msra.mxu0 0.0
    %2205 = vmatprep.subr.mxu0 0.0
    %2206 = vmatpush1.msra.mxu0 0.0
    %2207 = vmatprep.subr.mxu0 0.0
    %2208 = vmatpush1.msra.mxu0 0.0
    %2209 = vmatprep.subr.mxu0 0.0
    %2210 = vmatpush1.msra.mxu0 0.0
    %2211 = vmatprep.subr.mxu0 0.0
    %2212 = vmatpush1.msra.mxu0 0.0
    %2213 = vmatprep.subr.mxu0 0.0
    %2214 = vmatpush1.msra.mxu0 0.0
    %2215 = vmatprep.subr.mxu0 0.0
    %2216 = vmatpush1.msra.mxu0 0.0
    %2217 = vmatprep.subr.mxu0 0.0
    %2218 = vmatpush1.msra.mxu0 0.0
    %2219 = vmatprep.subr.mxu0 0.0
    %2220 = vmatpush1.msra.mxu0 0.0
    %2221 = vmatprep.subr.mxu0 0.0
    %2222 = vmatpush1.msra.mxu0 0.0
    %2223 = vmatprep.subr.mxu0 0.0
    %2224 = vmatpush1.msra.mxu0 0.0
    %2225 = vmatprep.subr.mxu0 0.0
    %2226 = vmatpush1.msra.mxu0 0.0
    %2227 = vmatprep.mubr.f32.mxu0 0.0
    %2228 = vmatmul.mubr.f32.gmra.mrb[0].mxu0 %v2161
    %v2229 = vpop.f32.mrb[0].mxu0
    %v2230 = vadd.f32 0.0, %v2229
    %v2231 = vpop.f32.mrb[0].mxu0
    %2232 = vdwg.mxu0
    %v2233 = vadd.f32 %v2158, %v2230
    %vm2234 = vcmask 17408
    %2235 = vst.msk [vmem:[#allocation2] sm:$0x3] %vm2234, %v2233
    // Predicated region
    $region10: #{deepconvnet_forward.1} parent=1 // pred_check
      _
    $region11: #{deepconvnet_forward.1} parent=1 // pred_check_branch
      %2237 = sbr.rel (0) target = $region13
    $region12: #{deepconvnet_forward.1} parent=1 // pred_region
      %s2239 = ssub.s32 32, 32
      %2240 = vsyncadd [#allocation3], %s2239
      %s2242 = sshll.u32 [#allocation2], 4
      %s2243 = int_to_ptr.vmem [resolvable:$true] %s2242
      %2245 = dma.vmem_to_hbm [thread:$0]  %s2243, 32, %s2, [#allocation3]
    $region13: #{deepconvnet_forward.1} parent=1 // pred_fallthru
      _
    // Predicated region
    $region14: #{deepconvnet_forward.1} parent=1 // pred_check
      _
    $region15: #{deepconvnet_forward.1} parent=1 // pred_check_branch
      %2247 = sbr.rel (0) target = $region17
    $region16: #{deepconvnet_forward.1} parent=1 // pred_region
      %2248 = dma.done [#allocation3], 32
    $region17: #{deepconvnet_forward.1} parent=1 // pred_fallthru
      _
    %2249 = vsyncpa [#allocation3], 1

</llo_original>
